<compile_context>
chip_gen: v7x
topology: tpu7x:2x2x1
jax: 0.10.0
libtpu: 0.0.40
codegen_flags: <defaults>
</compile_context>

<pallas_src>
import functools

import jax
import jax.numpy as jnp
from jax.experimental import pallas as pl
from jax.experimental.pallas import tpu as pltpu


LANE = 128
RESIDENT_LIMIT_BYTES = 8 * 1024 * 1024   # keep h / z fully VMEM-resident below this
VMEM_LIMIT_BYTES = 48 * 1024 * 1024      # > v5e/v6e scoped defaults, < v7x 64 MiB physical


def _round_up(x, m):
    return ((x + m - 1) // m) * m


def _pick_tiles(n_p):
    """Row tile TM (<=1024) and reduction tile TK (<=256), both dividing n_p.

    Keeps >= 2 row tiles when possible so the 'parallel' row axis can shard
    across both v7x TensorCores."""
    tk = 256 if n_p % 256 == 0 else 128
    tm = 128
    for cand in (1024, 512, 256):
        if n_p % cand == 0:
            tm = cand
            break
    while n_p // tm < 2 and tm > 128:
        tm //= 2
    return tm, tk


# ----------------------------------------------------------------------------
# Kernel 1: fused aggregation + projection     out = (adj @ h) @ W + b
#   grid = (row tiles, reduction tiles); f32 accumulator in VMEM scratch.
# ----------------------------------------------------------------------------
def agg_proj_kernel(adj_ref, h_ref, w_ref, b_ref, o_ref, acc_ref, *, tk, h_resident):
    k = pl.program_id(1)

    @pl.when(k == 0)
    def _():
        acc_ref[...] = jnp.zeros_like(acc_ref)

    # adj is stored int8 (exact 0/1); cast to bf16 right before the MXU dot.
    adj_t = adj_ref[...].astype(jnp.float32).astype(jnp.bfloat16)
    if h_resident:
        start = pl.multiple_of(k * tk, tk)
        h_t = h_ref[pl.ds(start, tk), :]
    else:
        h_t = h_ref[...]
    acc_ref[...] += jnp.dot(adj_t, h_t, preferred_element_type=jnp.float32)

    @pl.when(k == pl.num_programs(1) - 1)
    def _():
        out = jnp.dot(
            acc_ref[...].astype(jnp.bfloat16),
            w_ref[...],
            preferred_element_type=jnp.float32,
        ) + b_ref[...]
        o_ref[...] = out.astype(o_ref.dtype)


def gin_agg_proj(adj_p, h_p, w_masked, b2d, *, tm, tk, out_dtype):
    """out = (adj_p @ h_p) @ w_masked + b2d   on padded, lane-dense operands."""
    n_p = adj_p.shape[0]
    f_in = h_p.shape[1]
    f_out = w_masked.shape[1]
    grid = (n_p // tm, n_p // tk)

    h_resident = (n_p * f_in * 2) <= RESIDENT_LIMIT_BYTES
    if h_resident:
        h_spec = pl.BlockSpec((n_p, f_in), lambda i, k: (0, 0))   # loaded once
        h_reads = 1
    else:
        h_spec = pl.BlockSpec((tk, f_in), lambda i, k: (k, 0))    # re-read per row tile
        h_reads = n_p // tm

    out_bytes = jnp.dtype(out_dtype).itemsize
    flops = 2 * n_p * n_p * f_in + 2 * n_p * f_in * f_out
    bytes_accessed = (
        n_p * n_p * 1                  # adj, int8
        + h_reads * n_p * f_in * 2     # h (accounts for the re-read factor)
        + f_in * f_out * 2             # masked W (constant index map -> once)
        + 4 * f_out                    # bias
        + n_p * f_out * out_bytes      # output
    )

    kernel = functools.partial(agg_proj_kernel, tk=tk, h_resident=h_resident)
    return pl.pallas_call(
        kernel,
        out_shape=jax.ShapeDtypeStruct((n_p, f_out), out_dtype),
        grid_spec=pltpu.PrefetchScalarGridSpec(
            num_scalar_prefetch=0,
            grid=grid,
            in_specs=[
                pl.BlockSpec((tm, tk), lambda i, k: (i, k)),       # adj tile (int8)
                h_spec,                                            # h (resident/streamed)
                pl.BlockSpec((f_in, f_out), lambda i, k: (0, 0)),  # masked W (resident)
                pl.BlockSpec((1, f_out), lambda i, k: (0, 0)),     # bias (resident)
            ],
            out_specs=pl.BlockSpec((tm, f_out), lambda i, k: (i, 0)),
            scratch_shapes=[pltpu.VMEM((tm, f_in), jnp.float32)],
        ),
        compiler_params=pltpu.CompilerParams(
            dimension_semantics=("parallel", "arbitrary"),
            vmem_limit_bytes=VMEM_LIMIT_BYTES,
        ),
        cost_estimate=pl.CostEstimate(
            flops=flops, transcendentals=0, bytes_accessed=bytes_accessed
        ),
    )(adj_p, h_p, w_masked, b2d)


# ----------------------------------------------------------------------------
# Kernel 2: projection only                    z = h @ W        (row-tiled)
# ----------------------------------------------------------------------------
def proj_kernel(x_ref, w_ref, o_ref):
    o_ref[...] = jnp.dot(
        x_ref[...], w_ref[...], preferred_element_type=jnp.float32
    ).astype(o_ref.dtype)


def gin_proj(h_p, w_masked, *, tm):
    n_p, f_in = h_p.shape
    f_out = w_masked.shape[1]
    grid = (n_p // tm,)
    flops = 2 * n_p * f_in * f_out
    bytes_accessed = n_p * f_in * 2 + f_in * f_out * 2 + n_p * f_out * 2
    return pl.pallas_call(
        proj_kernel,
        out_shape=jax.ShapeDtypeStruct((n_p, f_out), jnp.bfloat16),
        grid_spec=pltpu.PrefetchScalarGridSpec(
            num_scalar_prefetch=0,
            grid=grid,
            in_specs=[
                pl.BlockSpec((tm, f_in), lambda i: (i, 0)),
                pl.BlockSpec((f_in, f_out), lambda i: (0, 0)),     # W resident
            ],
            out_specs=pl.BlockSpec((tm, f_out), lambda i: (i, 0)),
        ),
        compiler_params=pltpu.CompilerParams(
            dimension_semantics=("parallel",),
            vmem_limit_bytes=VMEM_LIMIT_BYTES,
        ),
        cost_estimate=pl.CostEstimate(
            flops=flops, transcendentals=0, bytes_accessed=bytes_accessed
        ),
    )(h_p, w_masked)


# ----------------------------------------------------------------------------
# Kernel 3: aggregation + bias                 out = adj @ z + b
# ----------------------------------------------------------------------------
def agg_bias_kernel(adj_ref, z_ref, b_ref, o_ref, acc_ref, *, tk, z_resident):
    k = pl.program_id(1)

    @pl.when(k == 0)
    def _():
        acc_ref[...] = jnp.zeros_like(acc_ref)

    adj_t = adj_ref[...].astype(jnp.float32).astype(jnp.bfloat16)
    if z_resident:
        start = pl.multiple_of(k * tk, tk)
        z_t = z_ref[pl.ds(start, tk), :]
    else:
        z_t = z_ref[...]
    acc_ref[...] += jnp.dot(adj_t, z_t, preferred_element_type=jnp.float32)

    @pl.when(k == pl.num_programs(1) - 1)
    def _():
        o_ref[...] = (acc_ref[...] + b_ref[...]).astype(o_ref.dtype)


def gin_agg_bias(adj_p, z_p, b2d, *, tm, tk, out_dtype):
    n_p = adj_p.shape[0]
    f_out = z_p.shape[1]
    grid = (n_p // tm, n_p // tk)

    z_resident = (n_p * f_out * 2) <= RESIDENT_LIMIT_BYTES
    if z_resident:
        z_spec = pl.BlockSpec((n_p, f_out), lambda i, k: (0, 0))
        z_reads = 1
    else:
        z_spec = pl.BlockSpec((tk, f_out), lambda i, k: (k, 0))
        z_reads = n_p // tm

    out_bytes = jnp.dtype(out_dtype).itemsize
    flops = 2 * n_p * n_p * f_out
    bytes_accessed = (
        n_p * n_p * 1
        + z_reads * n_p * f_out * 2
        + 4 * f_out
        + n_p * f_out * out_bytes
    )

    kernel = functools.partial(agg_bias_kernel, tk=tk, z_resident=z_resident)
    return pl.pallas_call(
        kernel,
        out_shape=jax.ShapeDtypeStruct((n_p, f_out), out_dtype),
        grid_spec=pltpu.PrefetchScalarGridSpec(
            num_scalar_prefetch=0,
            grid=grid,
            in_specs=[
                pl.BlockSpec((tm, tk), lambda i, k: (i, k)),       # adj tile (int8)
                z_spec,                                            # projected feats
                pl.BlockSpec((1, f_out), lambda i, k: (0, 0)),     # bias (resident)
            ],
            out_specs=pl.BlockSpec((tm, f_out), lambda i, k: (i, 0)),
            scratch_shapes=[pltpu.VMEM((tm, f_out), jnp.float32)],
        ),
        compiler_params=pltpu.CompilerParams(
            dimension_semantics=("parallel", "arbitrary"),
            vmem_limit_bytes=VMEM_LIMIT_BYTES,
        ),
        cost_estimate=pl.CostEstimate(
            flops=flops, transcendentals=0, bytes_accessed=bytes_accessed
        ),
    )(adj_p, z_p, b2d)


# ----------------------------------------------------------------------------
# Parameter construction + threshold (glue, plain JAX)
# ----------------------------------------------------------------------------
def init_params(key, num_feats, dim_hidden, num_classes, num_layers):
    """Each GIN layer i has a single Linear (n_mlp_layers=1):
       weight stored pre-transposed as (in, out), bias (out,), score (in, out)."""
    dims = []
    for layer in range(num_layers):
        if layer == 0:
            dims.append((num_feats, dim_hidden))
        elif layer < num_layers - 1:
            dims.append((dim_hidden, dim_hidden))
        else:
            dims.append((dim_hidden, num_classes))

    params = []
    for (fin, fout) in dims:
        key, kw, kb, ks = jax.random.split(key, 4)
        scale = 1.0 / jnp.sqrt(jnp.float32(fin))
        w_t = jax.random.uniform(kw, (fin, fout), jnp.float32, -scale, scale)
        b = jax.random.uniform(kb, (fout,), jnp.float32, -scale, scale)
        score_t = jax.random.normal(ks, (fin, fout), jnp.float32) * scale
        params.append({"w_t": w_t, "b": b, "score_t": score_t})
    return params


def get_threshold(params, sparsity):
    """percentile(|concat(scores)|, sparsity*100) with PyTorch kthvalue rounding."""
    flat = jnp.concatenate([p["score_t"].reshape(-1) for p in params])
    flat = jnp.abs(flat)  # enable_abs_comp == True
    numel = flat.shape[0]
    k = 1 + int(round(sparsity * (numel - 1)))
    return jnp.sort(flat)[k - 1]


# ----------------------------------------------------------------------------
# Adjacency preprocessing: done ONCE outside the jitted forward (adj is static
# across forwards), cast to int8 before padding.
# ----------------------------------------------------------------------------
def preprocess_adj(adj):
    n = adj.shape[0]
    n_p = _round_up(n, LANE)
    adj_i8 = adj.astype(jnp.int8)                  # exact for 0/1 values
    return jnp.pad(adj_i8, ((0, n_p - n), (0, n_p - n)))


# ----------------------------------------------------------------------------
# Full forward (jitted): mask weights once, pad lane-dense, run layers with the
# cheaper of (adj@h)@W vs adj@(h@W) per layer.
# ----------------------------------------------------------------------------
@jax.jit
def dmgin_forward(adj_p, h, params, threshold):
    n_p = adj_p.shape[0]
    n = h.shape[0]
    num_classes = params[-1]["w_t"].shape[1]
    tm, tk = _pick_tiles(n_p)
    n_layers = len(params)

    # Node features: cast to storage dtype first, then pad lane-dense.
    f0 = h.shape[1]
    f0_p = _round_up(f0, LANE)
    x = jnp.pad(h.astype(jnp.bfloat16), ((0, n_p - n), (0, f0_p - f0)))

    for li, p in enumerate(params):
        f_in, f_out = p["w_t"].shape
        f_in_p = _round_up(f_in, LANE)
        f_out_p = _round_up(f_out, LANE)

        # Supermask hoisted out of the kernel (strict '>' as in the reference).
        keep = (jnp.abs(p["score_t"]) > threshold).astype(jnp.float32)
        w_m = (p["w_t"] * keep).astype(jnp.bfloat16)
        w_m = jnp.pad(w_m, ((0, f_in_p - f_in), (0, f_out_p - f_out)))
        b2d = jnp.pad(p["b"].reshape(1, f_out).astype(jnp.float32),
                      ((0, 0), (0, f_out_p - f_out)))

        out_dtype = jnp.float32 if li == n_layers - 1 else jnp.bfloat16
        if f_out_p < f_in_p:
            # (adj @ h) @ W == adj @ (h @ W): project first when it narrows the
            # N^2-scaled aggregation (classifier layer).
            z = gin_proj(x, w_m, tm=tm)
            x = gin_agg_bias(adj_p, z, b2d, tm=tm, tk=tk, out_dtype=out_dtype)
        else:
            x = gin_agg_proj(adj_p, x, w_m, b2d, tm=tm, tk=tk, out_dtype=out_dtype)

    return x[:n, :num_classes]


# ----------------------------------------------------------------------------
# Pure-JAX reference mirroring the kernel's numerics (bf16 operands, f32 accum,
# same per-layer matmul ordering).
# ----------------------------------------------------------------------------
def dmgin_ref(adj, h, params, threshold):
    hi = jax.lax.Precision.HIGHEST
    adj_f = adj.astype(jnp.float32)
    x = h.astype(jnp.bfloat16).astype(jnp.float32)
    n_layers = len(params)
    for li, p in enumerate(params):
        f_in, f_out = p["w_t"].shape
        f_in_p = _round_up(f_in, LANE)
        f_out_p = _round_up(f_out, LANE)
        keep = (jnp.abs(p["score_t"]) > threshold).astype(jnp.float32)
        w_m = (p["w_t"] * keep).astype(jnp.bfloat16).astype(jnp.float32)
        if f_out_p < f_in_p:
            z = jnp.dot(x, w_m, precision=hi)
            z = z.astype(jnp.bfloat16).astype(jnp.float32)
            x = jnp.dot(adj_f, z, precision=hi) + p["b"][None, :]
        else:
            agg = jnp.dot(adj_f, x, precision=hi)
            agg = agg.astype(jnp.bfloat16).astype(jnp.float32)
            x = jnp.dot(agg, w_m, precision=hi) + p["b"][None, :]
        if li < n_layers - 1:
            x = x.astype(jnp.bfloat16).astype(jnp.float32)  # kernel stores bf16 intermediates
    return x


if __name__ == "__main__":
    # Small, forward-consistent shapes. DIM_HIDDEN > 128 so the classifier layer
    # exercises the reordered adj @ (h @ W) path as well as the fused path.
    N_NODES = 64
    NUM_FEATS = 16
    DIM_HIDDEN = 256
    NUM_CLASSES = 8
    NUM_LAYERS = 3
    LINEAR_SPARSITY = 0.5

    key = jax.random.PRNGKey(0)
    key, k_adj, k_h, k_par = jax.random.split(key, 4)

    # Node features (N, num_feats).
    h = jax.random.normal(k_h, (N_NODES, NUM_FEATS), jnp.float32)

    # Dense symmetric binary adjacency (no self loops), as g.adjacency_matrix.
    a = (jax.random.uniform(k_adj, (N_NODES, N_NODES)) < 0.15).astype(jnp.float32)
    adj = jnp.maximum(a, a.T)
    adj = adj * (1.0 - jnp.eye(N_NODES, dtype=jnp.float32))

    params = init_params(k_par, NUM_FEATS, DIM_HIDDEN, NUM_CLASSES, NUM_LAYERS)
    threshold = get_threshold(params, LINEAR_SPARSITY)

    adj_p = preprocess_adj(adj)   # int8, lane-padded; computed once and reused

    out = dmgin_forward(adj_p, h, params, threshold)
    out = jax.block_until_ready(out)

    ref = dmgin_ref(adj, h, params, threshold)
    assert out.shape == (N_NODES, NUM_CLASSES)
    assert jnp.allclose(out, ref, atol=1e-2, rtol=1e-2), "mismatch vs JAX reference"

    print("KERNEL_OK")
</pallas_src>

<mosaic_0001>
module attributes {stable_mosaic.version = 11 : i64} {
  func.func @agg_bias_kernel(%arg0: i32, %arg1: i32, %arg2: memref<128x128xi8, #tpu.memory_space<vmem>>, %arg3: memref<128x128xbf16, #tpu.memory_space<vmem>>, %arg4: memref<1x128xf32, #tpu.memory_space<vmem>>, %arg5: memref<128x128xf32, #tpu.memory_space<vmem>>, %arg6: memref<128x128xf32, #tpu.memory_space<vmem>>) attributes {dimension_semantics = [#tpu.dimension_semantics<parallel>, #tpu.dimension_semantics<arbitrary>], iteration_bounds = array<i64: 1, 1>, scalar_prefetch = 0 : i64, scratch_operands = 1 : i64, tpu.core_type = #tpu.core_type<tc>, window_params = [{transform_indices = @transform_0, window_bounds = array<i64: 128, 128>}, {pipeline_mode = #tpu.pipeline_mode<synchronous>, transform_indices = @transform_1, window_bounds = array<i64: 128, 128>}, {pipeline_mode = #tpu.pipeline_mode<synchronous>, transform_indices = @transform_2, window_bounds = array<i64: 1, 128>}, {transform_indices = @transform_3, window_bounds = array<i64: 128, 128>}]} {
    %c0_i32 = arith.constant 0 : i32
    %0 = arith.cmpi eq, %arg1, %c0_i32 : i32
    %1 = arith.extui %0 : i1 to i32
    %c0_i32_0 = arith.constant 0 : i32
    %2 = arith.cmpi ne, %1, %c0_i32_0 : i32
    scf.if %2 {
      %cst_9 = arith.constant 0.000000e+00 : f32
      %17 = vector.broadcast %cst_9 : f32 to vector<128x128xf32>
      %c0_10 = arith.constant 0 : index
      %c0_11 = arith.constant 0 : index
      %18 = vector.load %arg6[%c0_10, %c0_11] : memref<128x128xf32, #tpu.memory_space<vmem>>, vector<128x128xf32>
      tpu.vector_store %arg6[%c0_10, %c0_11], %17 {strides = array<i32>} : memref<128x128xf32, #tpu.memory_space<vmem>>, vector<128x128xf32>,
    } else {
    }
    %c0 = arith.constant 0 : index
    %c0_1 = arith.constant 0 : index
    %3 = vector.load %arg2[%c0, %c0_1] : memref<128x128xi8, #tpu.memory_space<vmem>>, vector<128x128xi8>
    %4 = arith.sitofp %3 : vector<128x128xi8> to vector<128x128xf32>
    %5 = arith.truncf %4 : vector<128x128xf32> to vector<128x128xbf16>
    %c128_i32 = arith.constant 128 : i32
    %6 = arith.muli %arg1, %c128_i32 : i32
    %7 = tpu.assume_multiple %6, 128 : i32
    %8 = arith.index_cast %7 : i32 to index
    %c0_2 = arith.constant 0 : index
    %9 = vector.load %arg3[%8, %c0_2] : memref<128x128xbf16, #tpu.memory_space<vmem>>, vector<128x128xbf16>
    %c0_3 = arith.constant 0 : index
    %c0_4 = arith.constant 0 : index
    %10 = vector.load %arg6[%c0_3, %c0_4] : memref<128x128xf32, #tpu.memory_space<vmem>>, vector<128x128xf32>
    %cst = arith.constant dense<0.000000e+00> : vector<128x128xf32>
    %11 = tpu.matmul %5, %9, %cst {dimension_numbers = #tpu.dot_dimension_numbers<[1], [0], [0], [1], [0, 0, 1, 1], [], []>} : vector<128x128xbf16>, vector<128x128xbf16>, vector<128x128xf32> -> vector<128x128xf32>
    %12 = arith.addf %10, %11 : vector<128x128xf32>
    %c0_5 = arith.constant 0 : index
    %c0_6 = arith.constant 0 : index
    %13 = vector.load %arg6[%c0_5, %c0_6] : memref<128x128xf32, #tpu.memory_space<vmem>>, vector<128x128xf32>
    tpu.vector_store %arg6[%c0_5, %c0_6], %12 {strides = array<i32>} : memref<128x128xf32, #tpu.memory_space<vmem>>, vector<128x128xf32>,
    %c0_i32_7 = arith.constant 0 : i32
    %14 = arith.cmpi eq, %arg1, %c0_i32_7 : i32
    %15 = arith.extui %14 : i1 to i32
    %c0_i32_8 = arith.constant 0 : i32
    %16 = arith.cmpi ne, %15, %c0_i32_8 : i32
    scf.if %16 {
      %c0_9 = arith.constant 0 : index
      %c0_10 = arith.constant 0 : index
      %17 = vector.load %arg6[%c0_9, %c0_10] : memref<128x128xf32, #tpu.memory_space<vmem>>, vector<128x128xf32>
      %c0_11 = arith.constant 0 : index
      %c0_12 = arith.constant 0 : index
      %18 = vector.load %arg4[%c0_11, %c0_12] : memref<1x128xf32, #tpu.memory_space<vmem>>, vector<1x128xf32>
      %19 = vector.broadcast %18 : vector<1x128xf32> to vector<128x128xf32>
      %20 = arith.addf %17, %19 : vector<128x128xf32>
      %c0_13 = arith.constant 0 : index
      %c0_14 = arith.constant 0 : index
      %21 = vector.load %arg5[%c0_13, %c0_14] : memref<128x128xf32, #tpu.memory_space<vmem>>, vector<128x128xf32>
      tpu.vector_store %arg5[%c0_13, %c0_14], %20 {strides = array<i32>} : memref<128x128xf32, #tpu.memory_space<vmem>>, vector<128x128xf32>,
    } else {
    }
    return
  }
  func.func @transform_0(%arg0: i32, %arg1: i32) -> (i32, i32) {
    %c0_i32 = arith.constant 0 : i32
    return %arg0, %arg1 : i32, i32
  }
  func.func @transform_1(%arg0: i32, %arg1: i32) -> (i32, i32) {
    %c0_i32 = arith.constant 0 : i32
    %c0_i32_0 = arith.constant 0 : i32
    %c0_i32_1 = arith.constant 0 : i32
    return %c0_i32, %c0_i32_0 : i32, i32
  }
  func.func @transform_2(%arg0: i32, %arg1: i32) -> (i32, i32) {
    %c0_i32 = arith.constant 0 : i32
    %c0_i32_0 = arith.constant 0 : i32
    %c0_i32_1 = arith.constant 0 : i32
    return %c0_i32, %c0_i32_0 : i32, i32
  }
  func.func @transform_3(%arg0: i32, %arg1: i32) -> (i32, i32) {
    %c0_i32 = arith.constant 0 : i32
    %c0_i32_0 = arith.constant 0 : i32
    return %arg0, %c0_i32 : i32, i32
  }
}

module attributes {stable_mosaic.version = 11 : i64} {
  func.func @agg_proj_kernel(%arg0: i32, %arg1: i32, %arg2: memref<128x128xi8, #tpu.memory_space<vmem>>, %arg3: memref<128x128xbf16, #tpu.memory_space<vmem>>, %arg4: memref<128x256xbf16, #tpu.memory_space<vmem>>, %arg5: memref<1x256xf32, #tpu.memory_space<vmem>>, %arg6: memref<128x256xbf16, #tpu.memory_space<vmem>>, %arg7: memref<128x128xf32, #tpu.memory_space<vmem>>) attributes {dimension_semantics = [#tpu.dimension_semantics<parallel>, #tpu.dimension_semantics<arbitrary>], iteration_bounds = array<i64: 1, 1>, scalar_prefetch = 0 : i64, scratch_operands = 1 : i64, tpu.core_type = #tpu.core_type<tc>, window_params = [{transform_indices = @transform_0, window_bounds = array<i64: 128, 128>}, {pipeline_mode = #tpu.pipeline_mode<synchronous>, transform_indices = @transform_1, window_bounds = array<i64: 128, 128>}, {pipeline_mode = #tpu.pipeline_mode<synchronous>, transform_indices = @transform_2, window_bounds = array<i64: 128, 256>}, {pipeline_mode = #tpu.pipeline_mode<synchronous>, transform_indices = @transform_3, window_bounds = array<i64: 1, 256>}, {transform_indices = @transform_4, window_bounds = array<i64: 128, 256>}]} {
    %c0_i32 = arith.constant 0 : i32
    %0 = arith.cmpi eq, %arg1, %c0_i32 : i32
    %1 = arith.extui %0 : i1 to i32
    %c0_i32_0 = arith.constant 0 : i32
    %2 = arith.cmpi ne, %1, %c0_i32_0 : i32
    scf.if %2 {
      %cst_9 = arith.constant 0.000000e+00 : f32
      %17 = vector.broadcast %cst_9 : f32 to vector<128x128xf32>
      %c0_10 = arith.constant 0 : index
      %c0_11 = arith.constant 0 : index
      %18 = vector.load %arg7[%c0_10, %c0_11] : memref<128x128xf32, #tpu.memory_space<vmem>>, vector<128x128xf32>
      tpu.vector_store %arg7[%c0_10, %c0_11], %17 {strides = array<i32>} : memref<128x128xf32, #tpu.memory_space<vmem>>, vector<128x128xf32>,
    } else {
    }
    %c0 = arith.constant 0 : index
    %c0_1 = arith.constant 0 : index
    %3 = vector.load %arg2[%c0, %c0_1] : memref<128x128xi8, #tpu.memory_space<vmem>>, vector<128x128xi8>
    %4 = arith.sitofp %3 : vector<128x128xi8> to vector<128x128xf32>
    %5 = arith.truncf %4 : vector<128x128xf32> to vector<128x128xbf16>
    %c128_i32 = arith.constant 128 : i32
    %6 = arith.muli %arg1, %c128_i32 : i32
    %7 = tpu.assume_multiple %6, 128 : i32
    %8 = arith.index_cast %7 : i32 to index
    %c0_2 = arith.constant 0 : index
    %9 = vector.load %arg3[%8, %c0_2] : memref<128x128xbf16, #tpu.memory_space<vmem>>, vector<128x128xbf16>
    %c0_3 = arith.constant 0 : index
    %c0_4 = arith.constant 0 : index
    %10 = vector.load %arg7[%c0_3, %c0_4] : memref<128x128xf32, #tpu.memory_space<vmem>>, vector<128x128xf32>
    %cst = arith.constant dense<0.000000e+00> : vector<128x128xf32>
    %11 = tpu.matmul %5, %9, %cst {dimension_numbers = #tpu.dot_dimension_numbers<[1], [0], [0], [1], [0, 0, 1, 1], [], []>} : vector<128x128xbf16>, vector<128x128xbf16>, vector<128x128xf32> -> vector<128x128xf32>
    %12 = arith.addf %10, %11 : vector<128x128xf32>
    %c0_5 = arith.constant 0 : index
    %c0_6 = arith.constant 0 : index
    %13 = vector.load %arg7[%c0_5, %c0_6] : memref<128x128xf32, #tpu.memory_space<vmem>>, vector<128x128xf32>
    tpu.vector_store %arg7[%c0_5, %c0_6], %12 {strides = array<i32>} : memref<128x128xf32, #tpu.memory_space<vmem>>, vector<128x128xf32>,
    %c0_i32_7 = arith.constant 0 : i32
    %14 = arith.cmpi eq, %arg1, %c0_i32_7 : i32
    %15 = arith.extui %14 : i1 to i32
    %c0_i32_8 = arith.constant 0 : i32
    %16 = arith.cmpi ne, %15, %c0_i32_8 : i32
    scf.if %16 {
      %c0_9 = arith.constant 0 : index
      %c0_10 = arith.constant 0 : index
      %17 = vector.load %arg7[%c0_9, %c0_10] : memref<128x128xf32, #tpu.memory_space<vmem>>, vector<128x128xf32>
      %18 = arith.truncf %17 : vector<128x128xf32> to vector<128x128xbf16>
      %c0_11 = arith.constant 0 : index
      %c0_12 = arith.constant 0 : index
      %19 = vector.load %arg4[%c0_11, %c0_12] : memref<128x256xbf16, #tpu.memory_space<vmem>>, vector<128x256xbf16>
      %cst_13 = arith.constant dense<0.000000e+00> : vector<128x256xf32>
      %20 = tpu.matmul %18, %19, %cst_13 {dimension_numbers = #tpu.dot_dimension_numbers<[1], [0], [0], [1], [0, 0, 1, 1], [], []>} : vector<128x128xbf16>, vector<128x256xbf16>, vector<128x256xf32> -> vector<128x256xf32>
      %c0_14 = arith.constant 0 : index
      %c0_15 = arith.constant 0 : index
      %21 = vector.load %arg5[%c0_14, %c0_15] : memref<1x256xf32, #tpu.memory_space<vmem>>, vector<1x256xf32>
      %22 = vector.broadcast %21 : vector<1x256xf32> to vector<128x256xf32>
      %23 = arith.addf %20, %22 : vector<128x256xf32>
      %24 = arith.truncf %23 : vector<128x256xf32> to vector<128x256xbf16>
      %c0_16 = arith.constant 0 : index
      %c0_17 = arith.constant 0 : index
      %25 = vector.load %arg6[%c0_16, %c0_17] : memref<128x256xbf16, #tpu.memory_space<vmem>>, vector<128x256xbf16>
      tpu.vector_store %arg6[%c0_16, %c0_17], %24 {strides = array<i32>} : memref<128x256xbf16, #tpu.memory_space<vmem>>, vector<128x256xbf16>,
    } else {
    }
    return
  }
  func.func @transform_0(%arg0: i32, %arg1: i32) -> (i32, i32) {
    %c0_i32 = arith.constant 0 : i32
    return %arg0, %arg1 : i32, i32
  }
  func.func @transform_1(%arg0: i32, %arg1: i32) -> (i32, i32) {
    %c0_i32 = arith.constant 0 : i32
    %c0_i32_0 = arith.constant 0 : i32
    %c0_i32_1 = arith.constant 0 : i32
    return %c0_i32, %c0_i32_0 : i32, i32
  }
  func.func @transform_2(%arg0: i32, %arg1: i32) -> (i32, i32) {
    %c0_i32 = arith.constant 0 : i32
    %c0_i32_0 = arith.constant 0 : i32
    %c0_i32_1 = arith.constant 0 : i32
    return %c0_i32, %c0_i32_0 : i32, i32
  }
  func.func @transform_3(%arg0: i32, %arg1: i32) -> (i32, i32) {
    %c0_i32 = arith.constant 0 : i32
    %c0_i32_0 = arith.constant 0 : i32
    %c0_i32_1 = arith.constant 0 : i32
    return %c0_i32, %c0_i32_0 : i32, i32
  }
  func.func @transform_4(%arg0: i32, %arg1: i32) -> (i32, i32) {
    %c0_i32 = arith.constant 0 : i32
    %c0_i32_0 = arith.constant 0 : i32
    return %arg0, %c0_i32 : i32, i32
  }
}

module attributes {stable_mosaic.version = 11 : i64} {
  func.func @agg_proj_kernel(%arg0: i32, %arg1: i32, %arg2: memref<128x128xi8, #tpu.memory_space<vmem>>, %arg3: memref<128x256xbf16, #tpu.memory_space<vmem>>, %arg4: memref<256x256xbf16, #tpu.memory_space<vmem>>, %arg5: memref<1x256xf32, #tpu.memory_space<vmem>>, %arg6: memref<128x256xbf16, #tpu.memory_space<vmem>>, %arg7: memref<128x256xf32, #tpu.memory_space<vmem>>) attributes {dimension_semantics = [#tpu.dimension_semantics<parallel>, #tpu.dimension_semantics<arbitrary>], iteration_bounds = array<i64: 1, 1>, scalar_prefetch = 0 : i64, scratch_operands = 1 : i64, tpu.core_type = #tpu.core_type<tc>, window_params = [{transform_indices = @transform_0, window_bounds = array<i64: 128, 128>}, {pipeline_mode = #tpu.pipeline_mode<synchronous>, transform_indices = @transform_1, window_bounds = array<i64: 128, 256>}, {pipeline_mode = #tpu.pipeline_mode<synchronous>, transform_indices = @transform_2, window_bounds = array<i64: 256, 256>}, {pipeline_mode = #tpu.pipeline_mode<synchronous>, transform_indices = @transform_3, window_bounds = array<i64: 1, 256>}, {transform_indices = @transform_4, window_bounds = array<i64: 128, 256>}]} {
    %c0_i32 = arith.constant 0 : i32
    %0 = arith.cmpi eq, %arg1, %c0_i32 : i32
    %1 = arith.extui %0 : i1 to i32
    %c0_i32_0 = arith.constant 0 : i32
    %2 = arith.cmpi ne, %1, %c0_i32_0 : i32
    scf.if %2 {
      %cst_9 = arith.constant 0.000000e+00 : f32
      %17 = vector.broadcast %cst_9 : f32 to vector<128x256xf32>
      %c0_10 = arith.constant 0 : index
      %c0_11 = arith.constant 0 : index
      %18 = vector.load %arg7[%c0_10, %c0_11] : memref<128x256xf32, #tpu.memory_space<vmem>>, vector<128x256xf32>
      tpu.vector_store %arg7[%c0_10, %c0_11], %17 {strides = array<i32>} : memref<128x256xf32, #tpu.memory_space<vmem>>, vector<128x256xf32>,
    } else {
    }
    %c0 = arith.constant 0 : index
    %c0_1 = arith.constant 0 : index
    %3 = vector.load %arg2[%c0, %c0_1] : memref<128x128xi8, #tpu.memory_space<vmem>>, vector<128x128xi8>
    %4 = arith.sitofp %3 : vector<128x128xi8> to vector<128x128xf32>
    %5 = arith.truncf %4 : vector<128x128xf32> to vector<128x128xbf16>
    %c128_i32 = arith.constant 128 : i32
    %6 = arith.muli %arg1, %c128_i32 : i32
    %7 = tpu.assume_multiple %6, 128 : i32
    %8 = arith.index_cast %7 : i32 to index
    %c0_2 = arith.constant 0 : index
    %9 = vector.load %arg3[%8, %c0_2] : memref<128x256xbf16, #tpu.memory_space<vmem>>, vector<128x256xbf16>
    %c0_3 = arith.constant 0 : index
    %c0_4 = arith.constant 0 : index
    %10 = vector.load %arg7[%c0_3, %c0_4] : memref<128x256xf32, #tpu.memory_space<vmem>>, vector<128x256xf32>
    %cst = arith.constant dense<0.000000e+00> : vector<128x256xf32>
    %11 = tpu.matmul %5, %9, %cst {dimension_numbers = #tpu.dot_dimension_numbers<[1], [0], [0], [1], [0, 0, 1, 1], [], []>} : vector<128x128xbf16>, vector<128x256xbf16>, vector<128x256xf32> -> vector<128x256xf32>
    %12 = arith.addf %10, %11 : vector<128x256xf32>
    %c0_5 = arith.constant 0 : index
    %c0_6 = arith.constant 0 : index
    %13 = vector.load %arg7[%c0_5, %c0_6] : memref<128x256xf32, #tpu.memory_space<vmem>>, vector<128x256xf32>
    tpu.vector_store %arg7[%c0_5, %c0_6], %12 {strides = array<i32>} : memref<128x256xf32, #tpu.memory_space<vmem>>, vector<128x256xf32>,
    %c0_i32_7 = arith.constant 0 : i32
    %14 = arith.cmpi eq, %arg1, %c0_i32_7 : i32
    %15 = arith.extui %14 : i1 to i32
    %c0_i32_8 = arith.constant 0 : i32
    %16 = arith.cmpi ne, %15, %c0_i32_8 : i32
    scf.if %16 {
      %c0_9 = arith.constant 0 : index
      %c0_10 = arith.constant 0 : index
      %17 = vector.load %arg7[%c0_9, %c0_10] : memref<128x256xf32, #tpu.memory_space<vmem>>, vector<128x256xf32>
      %18 = arith.truncf %17 : vector<128x256xf32> to vector<128x256xbf16>
      %c0_11 = arith.constant 0 : index
      %c0_12 = arith.constant 0 : index
      %19 = vector.load %arg4[%c0_11, %c0_12] : memref<256x256xbf16, #tpu.memory_space<vmem>>, vector<256x256xbf16>
      %cst_13 = arith.constant dense<0.000000e+00> : vector<128x256xf32>
      %20 = tpu.matmul %18, %19, %cst_13 {dimension_numbers = #tpu.dot_dimension_numbers<[1], [0], [0], [1], [0, 0, 1, 1], [], []>} : vector<128x256xbf16>, vector<256x256xbf16>, vector<128x256xf32> -> vector<128x256xf32>
      %c0_14 = arith.constant 0 : index
      %c0_15 = arith.constant 0 : index
      %21 = vector.load %arg5[%c0_14, %c0_15] : memref<1x256xf32, #tpu.memory_space<vmem>>, vector<1x256xf32>
      %22 = vector.broadcast %21 : vector<1x256xf32> to vector<128x256xf32>
      %23 = arith.addf %20, %22 : vector<128x256xf32>
      %24 = arith.truncf %23 : vector<128x256xf32> to vector<128x256xbf16>
      %c0_16 = arith.constant 0 : index
      %c0_17 = arith.constant 0 : index
      %25 = vector.load %arg6[%c0_16, %c0_17] : memref<128x256xbf16, #tpu.memory_space<vmem>>, vector<128x256xbf16>
      tpu.vector_store %arg6[%c0_16, %c0_17], %24 {strides = array<i32>} : memref<128x256xbf16, #tpu.memory_space<vmem>>, vector<128x256xbf16>,
    } else {
    }
    return
  }
  func.func @transform_0(%arg0: i32, %arg1: i32) -> (i32, i32) {
    %c0_i32 = arith.constant 0 : i32
    return %arg0, %arg1 : i32, i32
  }
  func.func @transform_1(%arg0: i32, %arg1: i32) -> (i32, i32) {
    %c0_i32 = arith.constant 0 : i32
    %c0_i32_0 = arith.constant 0 : i32
    %c0_i32_1 = arith.constant 0 : i32
    return %c0_i32, %c0_i32_0 : i32, i32
  }
  func.func @transform_2(%arg0: i32, %arg1: i32) -> (i32, i32) {
    %c0_i32 = arith.constant 0 : i32
    %c0_i32_0 = arith.constant 0 : i32
    %c0_i32_1 = arith.constant 0 : i32
    return %c0_i32, %c0_i32_0 : i32, i32
  }
  func.func @transform_3(%arg0: i32, %arg1: i32) -> (i32, i32) {
    %c0_i32 = arith.constant 0 : i32
    %c0_i32_0 = arith.constant 0 : i32
    %c0_i32_1 = arith.constant 0 : i32
    return %c0_i32, %c0_i32_0 : i32, i32
  }
  func.func @transform_4(%arg0: i32, %arg1: i32) -> (i32, i32) {
    %c0_i32 = arith.constant 0 : i32
    %c0_i32_0 = arith.constant 0 : i32
    return %arg0, %c0_i32 : i32, i32
  }
}

module attributes {stable_mosaic.version = 11 : i64} {
  func.func @proj_kernel(%arg0: i32, %arg1: memref<128x256xbf16, #tpu.memory_space<vmem>>, %arg2: memref<256x128xbf16, #tpu.memory_space<vmem>>, %arg3: memref<128x128xbf16, #tpu.memory_space<vmem>>) attributes {dimension_semantics = [#tpu.dimension_semantics<parallel>], iteration_bounds = array<i64: 1>, scalar_prefetch = 0 : i64, scratch_operands = 0 : i64, tpu.core_type = #tpu.core_type<tc>, window_params = [{transform_indices = @transform_0, window_bounds = array<i64: 128, 256>}, {pipeline_mode = #tpu.pipeline_mode<synchronous>, transform_indices = @transform_1, window_bounds = array<i64: 256, 128>}, {transform_indices = @transform_2, window_bounds = array<i64: 128, 128>}]} {
    %c0 = arith.constant 0 : index
    %c0_0 = arith.constant 0 : index
    %0 = vector.load %arg1[%c0, %c0_0] : memref<128x256xbf16, #tpu.memory_space<vmem>>, vector<128x256xbf16>
    %c0_1 = arith.constant 0 : index
    %c0_2 = arith.constant 0 : index
    %1 = vector.load %arg2[%c0_1, %c0_2] : memref<256x128xbf16, #tpu.memory_space<vmem>>, vector<256x128xbf16>
    %cst = arith.constant dense<0.000000e+00> : vector<128x128xf32>
    %2 = tpu.matmul %0, %1, %cst {dimension_numbers = #tpu.dot_dimension_numbers<[1], [0], [0], [1], [0, 0, 1, 1], [], []>} : vector<128x256xbf16>, vector<256x128xbf16>, vector<128x128xf32> -> vector<128x128xf32>
    %3 = arith.truncf %2 : vector<128x128xf32> to vector<128x128xbf16>
    %c0_3 = arith.constant 0 : index
    %c0_4 = arith.constant 0 : index
    %4 = vector.load %arg3[%c0_3, %c0_4] : memref<128x128xbf16, #tpu.memory_space<vmem>>, vector<128x128xbf16>
    tpu.vector_store %arg3[%c0_3, %c0_4], %3 {strides = array<i32>} : memref<128x128xbf16, #tpu.memory_space<vmem>>, vector<128x128xbf16>,
    return
  }
  func.func @transform_0(%arg0: i32) -> (i32, i32) {
    %c0_i32 = arith.constant 0 : i32
    %c0_i32_0 = arith.constant 0 : i32
    return %arg0, %c0_i32 : i32, i32
  }
  func.func @transform_1(%arg0: i32) -> (i32, i32) {
    %c0_i32 = arith.constant 0 : i32
    %c0_i32_0 = arith.constant 0 : i32
    %c0_i32_1 = arith.constant 0 : i32
    return %c0_i32, %c0_i32_0 : i32, i32
  }
  func.func @transform_2(%arg0: i32) -> (i32, i32) {
    %c0_i32 = arith.constant 0 : i32
    %c0_i32_0 = arith.constant 0 : i32
    return %arg0, %c0_i32 : i32, i32
  }
}

</mosaic_0001>

<llo_original>
// kernel: dmgin_forward.4
$region0: #{dmgin_forward.4}
  #allocation0 [shape = 'u32[]', space=smem, size = 0x4, offset = 0x4, fixed_abs, tag = 'smem constant byte address 0x4 - core index']
  #allocation1 [shape = 'u32[144,128]{1,0:T(1,128)}', space=vmem, size = 0x12000, scoped, tag = 'internal scratch']
  #allocation2 [shape = 'f32[128,128]{1,0:T(8,128)}', space=vmem, size = 0x10000, scoped, tag = 'scratch operand']
  %s0 = inlined_call_operand.vmem [shape: s8[128,128], index: 0, kind: input, shape index: {}]
  %s1 = inlined_call_operand.vmem [shape: bf16[128,128], index: 1, kind: input, shape index: {}]
  %s2 = inlined_call_operand.vmem [shape: bf16[128,256], index: 2, kind: input, shape index: {}]
  %s3 = inlined_call_operand.vmem [shape: f32[1,256], index: 3, kind: input, shape index: {}]
  %s4 = inlined_call_operand.vmem [shape: bf16[128,256], index: 4, kind: output, shape index: {}]
  %s5 = sld [smem:[#allocation0]]
  $region34: #{dmgin_forward.4} parent=0
    _
  %s7 = ssub.s32 1, %s5
  %s8 = scalar_select 0, %s7, %s5
  // Predicated region
  $region2: #{dmgin_forward.4} parent=0 // pred_check
    _
  $region3: #{dmgin_forward.4} parent=0 // pred_check_branch
    %10 = sbr.rel (0) target = $region5
  $region4: #{dmgin_forward.4} parent=0 // pred_region
    _
  $region5: #{dmgin_forward.4} parent=0 // pred_fallthru
    _
  // Predicated region
  $region6: #{dmgin_forward.4} parent=0 // pred_check
    _
  $region7: #{dmgin_forward.4} parent=0 // pred_check_branch
    %12 = sbr.rel (0) target = $region9
  $region8: #{dmgin_forward.4} parent=0 // pred_region
    _
  $region9: #{dmgin_forward.4} parent=0 // pred_fallthru
    _
  // Predicated region
  $region10: #{dmgin_forward.4} parent=0 // pred_check
    _
  $region11: #{dmgin_forward.4} parent=0 // pred_check_branch
    %14 = sbr.rel (0) target = $region13
  $region12: #{dmgin_forward.4} parent=0 // pred_region
    _
  $region13: #{dmgin_forward.4} parent=0 // pred_fallthru
    _
  // Predicated region
  $region14: #{dmgin_forward.4} parent=0 // pred_check
    _
  $region15: #{dmgin_forward.4} parent=0 // pred_check_branch
    %16 = sbr.rel (0) target = $region17
  $region16: #{dmgin_forward.4} parent=0 // pred_region
    _
  $region17: #{dmgin_forward.4} parent=0 // pred_fallthru
    _
  %p18 = scmp.eq.s32.totalorder 0, 0
  // Predicated region
  $region18: #{dmgin_forward.4} parent=0 // pred_check
    %p19 = pneg %p18
  $region19: #{dmgin_forward.4} parent=0 // pred_check_branch
    %21 = sbr.rel (%p19) target = $region21
  $region20: #{dmgin_forward.4} parent=0 // pred_region
    %22 = vst [vmem:[#allocation2] sm:$0xff] 0.0
    %23 = vst [vmem:[#allocation2 + $0x8] sm:$0xff] 0.0
    %24 = vst [vmem:[#allocation2 + $0x10] sm:$0xff] 0.0
    %25 = vst [vmem:[#allocation2 + $0x18] sm:$0xff] 0.0
    %26 = vst [vmem:[#allocation2 + $0x20] sm:$0xff] 0.0
    %27 = vst [vmem:[#allocation2 + $0x28] sm:$0xff] 0.0
    %28 = vst [vmem:[#allocation2 + $0x30] sm:$0xff] 0.0
    %29 = vst [vmem:[#allocation2 + $0x38] sm:$0xff] 0.0
    %30 = vst [vmem:[#allocation2 + $0x40] sm:$0xff] 0.0
    %31 = vst [vmem:[#allocation2 + $0x48] sm:$0xff] 0.0
    %32 = vst [vmem:[#allocation2 + $0x50] sm:$0xff] 0.0
    %33 = vst [vmem:[#allocation2 + $0x58] sm:$0xff] 0.0
    %34 = vst [vmem:[#allocation2 + $0x60] sm:$0xff] 0.0
    %35 = vst [vmem:[#allocation2 + $0x68] sm:$0xff] 0.0
    %36 = vst [vmem:[#allocation2 + $0x70] sm:$0xff] 0.0
    %37 = vst [vmem:[#allocation2 + $0x78] sm:$0xff] 0.0
  $region21: #{dmgin_forward.4} parent=0 // pred_fallthru
    _
  %v38 = vld [vmem:[%s0] sm:$0xff]
  %v39 = vld [vmem:[%s0 + $0x8] sm:$0xff]
  %v40 = vld [vmem:[%s0 + $0x10] sm:$0xff]
  %v41 = vld [vmem:[%s0 + $0x18] sm:$0xff]
  %v42 = vunpack.c.l.s8.bf16 %v38
  %v43 = vunpack.c.h.s8.bf16 %v38
  %v44 = vunpack.c.l.s8.bf16 %v39
  %v45 = vunpack.c.h.s8.bf16 %v39
  %v46 = vunpack.c.l.s8.bf16 %v40
  %v47 = vunpack.c.h.s8.bf16 %v40
  %v48 = vunpack.c.l.s8.bf16 %v41
  %v49 = vunpack.c.h.s8.bf16 %v41
  %s50 = smul.u32 0, 128
  %s51 = sshra.s32 %s50, 3
  %s52 = sand.u32 %s50, 7
  %s53 = smul.addr %s51, 4
  %s54 = scalar_lea.vmem %s1, %s53
  %v55 = vld [vmem:[%s54] sm:$0xf]
  %v56 = vld [vmem:[%s54 + $0x4] sm:$0xf]
  %v57 = vld [vmem:[%s54 + $0x8] sm:$0xf]
  %v58 = vld [vmem:[%s54 + $0xc] sm:$0xf]
  %v59 = vld [vmem:[%s54 + $0x10] sm:$0xf]
  %v60 = vld [vmem:[%s54 + $0x14] sm:$0xf]
  %v61 = vld [vmem:[%s54 + $0x18] sm:$0xf]
  %v62 = vld [vmem:[%s54 + $0x1c] sm:$0xf]
  %v63 = vld [vmem:[%s54 + $0x20] sm:$0xf]
  %v64 = vld [vmem:[%s54 + $0x24] sm:$0xf]
  %v65 = vld [vmem:[%s54 + $0x28] sm:$0xf]
  %v66 = vld [vmem:[%s54 + $0x2c] sm:$0xf]
  %v67 = vld [vmem:[%s54 + $0x30] sm:$0xf]
  %v68 = vld [vmem:[%s54 + $0x34] sm:$0xf]
  %v69 = vld [vmem:[%s54 + $0x38] sm:$0xf]
  %v70 = vld [vmem:[%s54 + $0x3c] sm:$0xf]
  %v71 = vld [vmem:[#allocation2] sm:$0xff]
  %v72 = vld [vmem:[#allocation2 + $0x8] sm:$0xff]
  %v73 = vld [vmem:[#allocation2 + $0x10] sm:$0xff]
  %v74 = vld [vmem:[#allocation2 + $0x18] sm:$0xff]
  %v75 = vld [vmem:[#allocation2 + $0x20] sm:$0xff]
  %v76 = vld [vmem:[#allocation2 + $0x28] sm:$0xff]
  %v77 = vld [vmem:[#allocation2 + $0x30] sm:$0xff]
  %v78 = vld [vmem:[#allocation2 + $0x38] sm:$0xff]
  %v79 = vld [vmem:[#allocation2 + $0x40] sm:$0xff]
  %v80 = vld [vmem:[#allocation2 + $0x48] sm:$0xff]
  %v81 = vld [vmem:[#allocation2 + $0x50] sm:$0xff]
  %v82 = vld [vmem:[#allocation2 + $0x58] sm:$0xff]
  %v83 = vld [vmem:[#allocation2 + $0x60] sm:$0xff]
  %v84 = vld [vmem:[#allocation2 + $0x68] sm:$0xff]
  %v85 = vld [vmem:[#allocation2 + $0x70] sm:$0xff]
  %v86 = vld [vmem:[#allocation2 + $0x78] sm:$0xff]
  %v103 = vunpack.c.l.b16 %v55
  %v104 = vunpack.c.l.b16 %v56
  %v105 = vunpack.c.l.b16 %v57
  %v106 = vunpack.c.l.b16 %v58
  %v107 = vunpack.c.l.b16 %v59
  %v108 = vunpack.c.l.b16 %v60
  %v109 = vunpack.c.l.b16 %v61
  %v110 = vunpack.c.l.b16 %v62
  %v111 = vunpack.c.l.b16 %v63
  %v112 = vunpack.c.l.b16 %v64
  %v113 = vunpack.c.l.b16 %v65
  %v114 = vunpack.c.l.b16 %v66
  %v115 = vunpack.c.l.b16 %v67
  %v116 = vunpack.c.l.b16 %v68
  %v117 = vunpack.c.l.b16 %v69
  %v118 = vunpack.c.l.b16 %v70
  %v119 = vpack.c.b16 %v104, %v103
  %v120 = vpack.c.b16 %v106, %v105
  %v121 = vpack.c.b16 %v108, %v107
  %v122 = vpack.c.b16 %v110, %v109
  %v123 = vpack.c.b16 %v112, %v111
  %v124 = vpack.c.b16 %v114, %v113
  %v125 = vpack.c.b16 %v116, %v115
  %v126 = vpack.c.b16 %v118, %v117
  %135 = vmatprep.subr.bf16.mxu0 0
  %136 = vmatpush1.bf16.msra.mxu0 %v119
  %137 = vmatprep.subr.bf16.mxu0 0
  %138 = vmatpush1.bf16.msra.mxu0 %v120
  %139 = vmatprep.subr.bf16.mxu0 0
  %140 = vmatpush1.bf16.msra.mxu0 %v121
  %141 = vmatprep.subr.bf16.mxu0 0
  %142 = vmatpush1.bf16.msra.mxu0 %v122
  %143 = vmatprep.subr.bf16.mxu0 0
  %144 = vmatpush1.bf16.msra.mxu0 %v123
  %145 = vmatprep.subr.bf16.mxu0 0
  %146 = vmatpush1.bf16.msra.mxu0 %v124
  %147 = vmatprep.subr.bf16.mxu0 0
  %148 = vmatpush1.bf16.msra.mxu0 %v125
  %149 = vmatprep.subr.bf16.mxu0 0
  %150 = vmatpush1.bf16.msra.mxu0 %v126
  %151 = vmatprep.subr.bf16.mxu0 0
  %152 = vmatpush1.bf16.msra.mxu0 0
  %153 = vmatprep.subr.bf16.mxu0 0
  %154 = vmatpush1.bf16.msra.mxu0 0
  %155 = vmatprep.subr.bf16.mxu0 0
  %156 = vmatpush1.bf16.msra.mxu0 0
  %157 = vmatprep.subr.bf16.mxu0 0
  %158 = vmatpush1.bf16.msra.mxu0 0
  %159 = vmatprep.subr.bf16.mxu0 0
  %160 = vmatpush1.bf16.msra.mxu0 0
  %161 = vmatprep.subr.bf16.mxu0 0
  %162 = vmatpush1.bf16.msra.mxu0 0
  %163 = vmatprep.subr.bf16.mxu0 0
  %164 = vmatpush1.bf16.msra.mxu0 0
  %165 = vmatprep.subr.bf16.mxu0 0
  %166 = vmatpush1.bf16.msra.mxu0 0
  %167 = vmatprep.mubr.bf16.mxu0 0
  %168 = vmatmul.mubr.bf16.gmra.mrb[0].mxu0 %v42
  %v169 = vpop.f32.mrb[0].mxu0
  %v170 = vadd.f32 0.0, %v169
  %v171 = vpop.f32.mrb[0].mxu0
  %v172 = vpop.f32.mrb[0].mxu0
  %v173 = vadd.f32 0.0, %v172
  %v174 = vpop.f32.mrb[0].mxu0
  %175 = vmatprep.mubr.bf16.mxu0 0
  %176 = vmatmul.mubr.bf16.gmra.mrb[0].mxu0 %v43
  %v177 = vpop.f32.mrb[0].mxu0
  %v178 = vadd.f32 0.0, %v177
  %v179 = vpop.f32.mrb[0].mxu0
  %v180 = vpop.f32.mrb[0].mxu0
  %v181 = vadd.f32 0.0, %v180
  %v182 = vpop.f32.mrb[0].mxu0
  %183 = vmatprep.mubr.bf16.mxu0 0
  %184 = vmatmul.mubr.bf16.gmra.mrb[0].mxu0 %v44
  %v185 = vpop.f32.mrb[0].mxu0
  %v186 = vadd.f32 0.0, %v185
  %v187 = vpop.f32.mrb[0].mxu0
  %v188 = vpop.f32.mrb[0].mxu0
  %v189 = vadd.f32 0.0, %v188
  %v190 = vpop.f32.mrb[0].mxu0
  %191 = vmatprep.mubr.bf16.mxu0 0
  %192 = vmatmul.mubr.bf16.gmra.mrb[0].mxu0 %v45
  %v193 = vpop.f32.mrb[0].mxu0
  %v194 = vadd.f32 0.0, %v193
  %v195 = vpop.f32.mrb[0].mxu0
  %v196 = vpop.f32.mrb[0].mxu0
  %v197 = vadd.f32 0.0, %v196
  %v198 = vpop.f32.mrb[0].mxu0
  %199 = vmatprep.mubr.bf16.mxu0 0
  %200 = vmatmul.mubr.bf16.gmra.mrb[0].mxu0 %v46
  %v201 = vpop.f32.mrb[0].mxu0
  %v202 = vadd.f32 0.0, %v201
  %v203 = vpop.f32.mrb[0].mxu0
  %v204 = vpop.f32.mrb[0].mxu0
  %v205 = vadd.f32 0.0, %v204
  %v206 = vpop.f32.mrb[0].mxu0
  %207 = vmatprep.mubr.bf16.mxu0 0
  %208 = vmatmul.mubr.bf16.gmra.mrb[0].mxu0 %v47
  %v209 = vpop.f32.mrb[0].mxu0
  %v210 = vadd.f32 0.0, %v209
  %v211 = vpop.f32.mrb[0].mxu0
  %v212 = vpop.f32.mrb[0].mxu0
  %v213 = vadd.f32 0.0, %v212
  %v214 = vpop.f32.mrb[0].mxu0
  %215 = vmatprep.mubr.bf16.mxu0 0
  %216 = vmatmul.mubr.bf16.gmra.mrb[0].mxu0 %v48
  %v217 = vpop.f32.mrb[0].mxu0
  %v218 = vadd.f32 0.0, %v217
  %v219 = vpop.f32.mrb[0].mxu0
  %v220 = vpop.f32.mrb[0].mxu0
  %v221 = vadd.f32 0.0, %v220
  %v222 = vpop.f32.mrb[0].mxu0
  %223 = vmatprep.mubr.bf16.mxu0 0
  %224 = vmatmul.mubr.bf16.gmra.mrb[0].mxu0 %v49
  %v225 = vpop.f32.mrb[0].mxu0
  %v226 = vadd.f32 0.0, %v225
  %v227 = vpop.f32.mrb[0].mxu0
  %v228 = vpop.f32.mrb[0].mxu0
  %v229 = vadd.f32 0.0, %v228
  %v230 = vpop.f32.mrb[0].mxu0
  %231 = vdwg.mxu0
  %v232 = vadd.f32 %v71, %v170
  %v233 = vadd.f32 %v72, %v173
  %v234 = vadd.f32 %v73, %v178
  %v235 = vadd.f32 %v74, %v181
  %v236 = vadd.f32 %v75, %v186
  %v237 = vadd.f32 %v76, %v189
  %v238 = vadd.f32 %v77, %v194
  %v239 = vadd.f32 %v78, %v197
  %v240 = vadd.f32 %v79, %v202
  %v241 = vadd.f32 %v80, %v205
  %v242 = vadd.f32 %v81, %v210
  %v243 = vadd.f32 %v82, %v213
  %v244 = vadd.f32 %v83, %v218
  %v245 = vadd.f32 %v84, %v221
  %v246 = vadd.f32 %v85, %v226
  %v247 = vadd.f32 %v86, %v229
  %248 = vst [vmem:[#allocation2] sm:$0xff] %v232
  %249 = vst [vmem:[#allocation2 + $0x8] sm:$0xff] %v233
  %250 = vst [vmem:[#allocation2 + $0x10] sm:$0xff] %v234
  %251 = vst [vmem:[#allocation2 + $0x18] sm:$0xff] %v235
  %252 = vst [vmem:[#allocation2 + $0x20] sm:$0xff] %v236
  %253 = vst [vmem:[#allocation2 + $0x28] sm:$0xff] %v237
  %254 = vst [vmem:[#allocation2 + $0x30] sm:$0xff] %v238
  %255 = vst [vmem:[#allocation2 + $0x38] sm:$0xff] %v239
  %256 = vst [vmem:[#allocation2 + $0x40] sm:$0xff] %v240
  %257 = vst [vmem:[#allocation2 + $0x48] sm:$0xff] %v241
  %258 = vst [vmem:[#allocation2 + $0x50] sm:$0xff] %v242
  %259 = vst [vmem:[#allocation2 + $0x58] sm:$0xff] %v243
  %260 = vst [vmem:[#allocation2 + $0x60] sm:$0xff] %v244
  %261 = vst [vmem:[#allocation2 + $0x68] sm:$0xff] %v245
  %262 = vst [vmem:[#allocation2 + $0x70] sm:$0xff] %v246
  %263 = vst [vmem:[#allocation2 + $0x78] sm:$0xff] %v247
  // Predicated region
  $region22: #{dmgin_forward.4} parent=0 // pred_check
    %p264 = pneg %p18
  $region23: #{dmgin_forward.4} parent=0 // pred_check_branch
    %266 = sbr.rel (%p264) target = $region25
  $region24: #{dmgin_forward.4} parent=0 // pred_region
    %v267 = vld [vmem:[#allocation2] sm:$0xff]
    %v268 = vld [vmem:[#allocation2 + $0x8] sm:$0xff]
    %v269 = vld [vmem:[#allocation2 + $0x10] sm:$0xff]
    %v270 = vld [vmem:[#allocation2 + $0x18] sm:$0xff]
    %v271 = vld [vmem:[#allocation2 + $0x20] sm:$0xff]
    %v272 = vld [vmem:[#allocation2 + $0x28] sm:$0xff]
    %v273 = vld [vmem:[#allocation2 + $0x30] sm:$0xff]
    %v274 = vld [vmem:[#allocation2 + $0x38] sm:$0xff]
    %v275 = vld [vmem:[#allocation2 + $0x40] sm:$0xff]
    %v276 = vld [vmem:[#allocation2 + $0x48] sm:$0xff]
    %v277 = vld [vmem:[#allocation2 + $0x50] sm:$0xff]
    %v278 = vld [vmem:[#allocation2 + $0x58] sm:$0xff]
    %v279 = vld [vmem:[#allocation2 + $0x60] sm:$0xff]
    %v280 = vld [vmem:[#allocation2 + $0x68] sm:$0xff]
    %v281 = vld [vmem:[#allocation2 + $0x70] sm:$0xff]
    %v282 = vld [vmem:[#allocation2 + $0x78] sm:$0xff]
    %v283 = vpack.c.bf16 %v268, %v267
    %v284 = vpack.c.bf16 %v270, %v269
    %v285 = vpack.c.bf16 %v272, %v271
    %v286 = vpack.c.bf16 %v274, %v273
    %v287 = vpack.c.bf16 %v276, %v275
    %v288 = vpack.c.bf16 %v278, %v277
    %v289 = vpack.c.bf16 %v280, %v279
    %v290 = vpack.c.bf16 %v282, %v281
    %v291 = vld [vmem:[%s2] sm:$0xff]
    %v292 = vld [vmem:[%s2 + $0x8] sm:$0xff]
    %v293 = vld [vmem:[%s2 + $0x10] sm:$0xff]
    %v294 = vld [vmem:[%s2 + $0x18] sm:$0xff]
    %v295 = vld [vmem:[%s2 + $0x20] sm:$0xff]
    %v296 = vld [vmem:[%s2 + $0x28] sm:$0xff]
    %v297 = vld [vmem:[%s2 + $0x30] sm:$0xff]
    %v298 = vld [vmem:[%s2 + $0x38] sm:$0xff]
    %v299 = vld [vmem:[%s2 + $0x40] sm:$0xff]
    %v300 = vld [vmem:[%s2 + $0x48] sm:$0xff]
    %v301 = vld [vmem:[%s2 + $0x50] sm:$0xff]
    %v302 = vld [vmem:[%s2 + $0x58] sm:$0xff]
    %v303 = vld [vmem:[%s2 + $0x60] sm:$0xff]
    %v304 = vld [vmem:[%s2 + $0x68] sm:$0xff]
    %v305 = vld [vmem:[%s2 + $0x70] sm:$0xff]
    %v306 = vld [vmem:[%s2 + $0x78] sm:$0xff]
    %v307 = vld [vmem:[%s3] sm:$0x3]
    %v309 = vlaneseq
    %v310 = vshrl.u32 %v309, 7
    %v311 = vsub.s32 0, %v310
    %v312 = vrot.slane %v307, %v311
    %v313 = vlaneseq
    %v314 = vshrl.u32 %v313, 7
    %v315 = vsub.s32 1, %v314
    %v316 = vrot.slane %v307, %v315
    %v335 = vunpack.c.l.b16 %v291
    %v336 = vunpack.c.h.b16 %v291
    %v337 = vunpack.c.l.b16 %v292
    %v338 = vunpack.c.h.b16 %v292
    %v339 = vunpack.c.l.b16 %v293
    %v340 = vunpack.c.h.b16 %v293
    %v341 = vunpack.c.l.b16 %v294
    %v342 = vunpack.c.h.b16 %v294
    %v343 = vunpack.c.l.b16 %v295
    %v344 = vunpack.c.h.b16 %v295
    %v345 = vunpack.c.l.b16 %v296
    %v346 = vunpack.c.h.b16 %v296
    %v347 = vunpack.c.l.b16 %v297
    %v348 = vunpack.c.h.b16 %v297
    %v349 = vunpack.c.l.b16 %v298
    %v350 = vunpack.c.h.b16 %v298
    %v351 = vunpack.c.l.b16 %v299
    %v352 = vunpack.c.h.b16 %v299
    %v353 = vunpack.c.l.b16 %v300
    %v354 = vunpack.c.h.b16 %v300
    %v355 = vunpack.c.l.b16 %v301
    %v356 = vunpack.c.h.b16 %v301
    %v357 = vunpack.c.l.b16 %v302
    %v358 = vunpack.c.h.b16 %v302
    %v359 = vunpack.c.l.b16 %v303
    %v360 = vunpack.c.h.b16 %v303
    %v361 = vunpack.c.l.b16 %v304
    %v362 = vunpack.c.h.b16 %v304
    %v363 = vunpack.c.l.b16 %v305
    %v364 = vunpack.c.h.b16 %v305
    %v365 = vunpack.c.l.b16 %v306
    %v366 = vunpack.c.h.b16 %v306
    %v367 = vpack.c.b16 %v337, %v335
    %v368 = vpack.c.b16 %v338, %v336
    %v369 = vpack.c.b16 %v341, %v339
    %v370 = vpack.c.b16 %v342, %v340
    %v371 = vpack.c.b16 %v345, %v343
    %v372 = vpack.c.b16 %v346, %v344
    %v373 = vpack.c.b16 %v349, %v347
    %v374 = vpack.c.b16 %v350, %v348
    %v375 = vpack.c.b16 %v353, %v351
    %v376 = vpack.c.b16 %v354, %v352
    %v377 = vpack.c.b16 %v357, %v355
    %v378 = vpack.c.b16 %v358, %v356
    %v379 = vpack.c.b16 %v361, %v359
    %v380 = vpack.c.b16 %v362, %v360
    %v381 = vpack.c.b16 %v365, %v363
    %v382 = vpack.c.b16 %v366, %v364
    %399 = vmatprep.subr.bf16.mxu0 %v368
    %400 = vmatpush1.bf16.msra.mxu0 %v367
    %401 = vmatprep.subr.bf16.mxu0 %v370
    %402 = vmatpush1.bf16.msra.mxu0 %v369
    %403 = vmatprep.subr.bf16.mxu0 %v372
    %404 = vmatpush1.bf16.msra.mxu0 %v371
    %405 = vmatprep.subr.bf16.mxu0 %v374
    %406 = vmatpush1.bf16.msra.mxu0 %v373
    %407 = vmatprep.subr.bf16.mxu0 %v376
    %408 = vmatpush1.bf16.msra.mxu0 %v375
    %409 = vmatprep.subr.bf16.mxu0 %v378
    %410 = vmatpush1.bf16.msra.mxu0 %v377
    %411 = vmatprep.subr.bf16.mxu0 %v380
    %412 = vmatpush1.bf16.msra.mxu0 %v379
    %413 = vmatprep.subr.bf16.mxu0 %v382
    %414 = vmatpush1.bf16.msra.mxu0 %v381
    %415 = vmatprep.subr.bf16.mxu0 0
    %416 = vmatpush1.bf16.msra.mxu0 0
    %417 = vmatprep.subr.bf16.mxu0 0
    %418 = vmatpush1.bf16.msra.mxu0 0
    %419 = vmatprep.subr.bf16.mxu0 0
    %420 = vmatpush1.bf16.msra.mxu0 0
    %421 = vmatprep.subr.bf16.mxu0 0
    %422 = vmatpush1.bf16.msra.mxu0 0
    %423 = vmatprep.subr.bf16.mxu0 0
    %424 = vmatpush1.bf16.msra.mxu0 0
    %425 = vmatprep.subr.bf16.mxu0 0
    %426 = vmatpush1.bf16.msra.mxu0 0
    %427 = vmatprep.subr.bf16.mxu0 0
    %428 = vmatpush1.bf16.msra.mxu0 0
    %429 = vmatprep.subr.bf16.mxu0 0
    %430 = vmatpush1.bf16.msra.mxu0 0
    %431 = vmatprep.mubr.bf16.mxu0 0
    %432 = vmatmul.mubr.bf16.gmra.mrb[0].mxu0 %v283
    %v433 = vpop.f32.mrb[0].mxu0
    %v434 = vadd.f32 %v312, %v433
    %v435 = vpop.f32.mrb[0].mxu0
    %v436 = vadd.f32 %v316, %v435
    %v437 = vpop.f32.mrb[0].mxu0
    %v438 = vadd.f32 %v312, %v437
    %v439 = vpop.f32.mrb[0].mxu0
    %v440 = vadd.f32 %v316, %v439
    %441 = vmatprep.mubr.bf16.mxu0 0
    %442 = vmatmul.mubr.bf16.gmra.mrb[0].mxu0 %v284
    %v443 = vpop.f32.mrb[0].mxu0
    %v444 = vadd.f32 %v312, %v443
    %v445 = vpop.f32.mrb[0].mxu0
    %v446 = vadd.f32 %v316, %v445
    %v447 = vpop.f32.mrb[0].mxu0
    %v448 = vadd.f32 %v312, %v447
    %v449 = vpop.f32.mrb[0].mxu0
    %v450 = vadd.f32 %v316, %v449
    %451 = vmatprep.mubr.bf16.mxu0 0
    %452 = vmatmul.mubr.bf16.gmra.mrb[0].mxu0 %v285
    %v453 = vpop.f32.mrb[0].mxu0
    %v454 = vadd.f32 %v312, %v453
    %v455 = vpop.f32.mrb[0].mxu0
    %v456 = vadd.f32 %v316, %v455
    %v457 = vpop.f32.mrb[0].mxu0
    %v458 = vadd.f32 %v312, %v457
    %v459 = vpop.f32.mrb[0].mxu0
    %v460 = vadd.f32 %v316, %v459
    %461 = vmatprep.mubr.bf16.mxu0 0
    %462 = vmatmul.mubr.bf16.gmra.mrb[0].mxu0 %v286
    %v463 = vpop.f32.mrb[0].mxu0
    %v464 = vadd.f32 %v312, %v463
    %v465 = vpop.f32.mrb[0].mxu0
    %v466 = vadd.f32 %v316, %v465
    %v467 = vpop.f32.mrb[0].mxu0
    %v468 = vadd.f32 %v312, %v467
    %v469 = vpop.f32.mrb[0].mxu0
    %v470 = vadd.f32 %v316, %v469
    %471 = vmatprep.mubr.bf16.mxu0 0
    %472 = vmatmul.mubr.bf16.gmra.mrb[0].mxu0 %v287
    %v473 = vpop.f32.mrb[0].mxu0
    %v474 = vadd.f32 %v312, %v473
    %v475 = vpop.f32.mrb[0].mxu0
    %v476 = vadd.f32 %v316, %v475
    %v477 = vpop.f32.mrb[0].mxu0
    %v478 = vadd.f32 %v312, %v477
    %v479 = vpop.f32.mrb[0].mxu0
    %v480 = vadd.f32 %v316, %v479
    %481 = vmatprep.mubr.bf16.mxu0 0
    %482 = vmatmul.mubr.bf16.gmra.mrb[0].mxu0 %v288
    %v483 = vpop.f32.mrb[0].mxu0
    %v484 = vadd.f32 %v312, %v483
    %v485 = vpop.f32.mrb[0].mxu0
    %v486 = vadd.f32 %v316, %v485
    %v487 = vpop.f32.mrb[0].mxu0
    %v488 = vadd.f32 %v312, %v487
    %v489 = vpop.f32.mrb[0].mxu0
    %v490 = vadd.f32 %v316, %v489
    %491 = vmatprep.mubr.bf16.mxu0 0
    %492 = vmatmul.mubr.bf16.gmra.mrb[0].mxu0 %v289
    %v493 = vpop.f32.mrb[0].mxu0
    %v494 = vadd.f32 %v312, %v493
    %v495 = vpop.f32.mrb[0].mxu0
    %v496 = vadd.f32 %v316, %v495
    %v497 = vpop.f32.mrb[0].mxu0
    %v498 = vadd.f32 %v312, %v497
    %v499 = vpop.f32.mrb[0].mxu0
    %v500 = vadd.f32 %v316, %v499
    %501 = vmatprep.mubr.bf16.mxu0 0
    %502 = vmatmul.mubr.bf16.gmra.mrb[0].mxu0 %v290
    %v503 = vpop.f32.mrb[0].mxu0
    %v504 = vadd.f32 %v312, %v503
    %v505 = vpop.f32.mrb[0].mxu0
    %v506 = vadd.f32 %v316, %v505
    %v507 = vpop.f32.mrb[0].mxu0
    %v508 = vadd.f32 %v312, %v507
    %v509 = vpop.f32.mrb[0].mxu0
    %v510 = vadd.f32 %v316, %v509
    %511 = vdwg.mxu0
    %v512 = vpack.c.bf16 %v438, %v434
    %v513 = vpack.c.bf16 %v440, %v436
    %v514 = vpack.c.bf16 %v448, %v444
    %v515 = vpack.c.bf16 %v450, %v446
    %v516 = vpack.c.bf16 %v458, %v454
    %v517 = vpack.c.bf16 %v460, %v456
    %v518 = vpack.c.bf16 %v468, %v464
    %v519 = vpack.c.bf16 %v470, %v466
    %v520 = vpack.c.bf16 %v478, %v474
    %v521 = vpack.c.bf16 %v480, %v476
    %v522 = vpack.c.bf16 %v488, %v484
    %v523 = vpack.c.bf16 %v490, %v486
    %v524 = vpack.c.bf16 %v498, %v494
    %v525 = vpack.c.bf16 %v500, %v496
    %v526 = vpack.c.bf16 %v508, %v504
    %v527 = vpack.c.bf16 %v510, %v506
    %v544 = vunpack.c.l.b16 %v512
    %v545 = vunpack.c.l.b16 %v513
    %v546 = vunpack.c.h.b16 %v512
    %v547 = vunpack.c.h.b16 %v513
    %v548 = vunpack.c.l.b16 %v514
    %v549 = vunpack.c.l.b16 %v515
    %v550 = vunpack.c.h.b16 %v514
    %v551 = vunpack.c.h.b16 %v515
    %v552 = vunpack.c.l.b16 %v516
    %v553 = vunpack.c.l.b16 %v517
    %v554 = vunpack.c.h.b16 %v516
    %v555 = vunpack.c.h.b16 %v517
    %v556 = vunpack.c.l.b16 %v518
    %v557 = vunpack.c.l.b16 %v519
    %v558 = vunpack.c.h.b16 %v518
    %v559 = vunpack.c.h.b16 %v519
    %v560 = vunpack.c.l.b16 %v520
    %v561 = vunpack.c.l.b16 %v521
    %v562 = vunpack.c.h.b16 %v520
    %v563 = vunpack.c.h.b16 %v521
    %v564 = vunpack.c.l.b16 %v522
    %v565 = vunpack.c.l.b16 %v523
    %v566 = vunpack.c.h.b16 %v522
    %v567 = vunpack.c.h.b16 %v523
    %v568 = vunpack.c.l.b16 %v524
    %v569 = vunpack.c.l.b16 %v525
    %v570 = vunpack.c.h.b16 %v524
    %v571 = vunpack.c.h.b16 %v525
    %v572 = vunpack.c.l.b16 %v526
    %v573 = vunpack.c.l.b16 %v527
    %v574 = vunpack.c.h.b16 %v526
    %v575 = vunpack.c.h.b16 %v527
    %v576 = vpack.c.b16 %v545, %v544
    %v577 = vpack.c.b16 %v547, %v546
    %v578 = vpack.c.b16 %v549, %v548
    %v579 = vpack.c.b16 %v551, %v550
    %v580 = vpack.c.b16 %v553, %v552
    %v581 = vpack.c.b16 %v555, %v554
    %v582 = vpack.c.b16 %v557, %v556
    %v583 = vpack.c.b16 %v559, %v558
    %v584 = vpack.c.b16 %v561, %v560
    %v585 = vpack.c.b16 %v563, %v562
    %v586 = vpack.c.b16 %v565, %v564
    %v587 = vpack.c.b16 %v567, %v566
    %v588 = vpack.c.b16 %v569, %v568
    %v589 = vpack.c.b16 %v571, %v570
    %v590 = vpack.c.b16 %v573, %v572
    %v591 = vpack.c.b16 %v575, %v574
    %608 = vst [vmem:[%s4] sm:$0xff] %v576
    %609 = vst [vmem:[%s4 + $0x8] sm:$0xff] %v577
    %610 = vst [vmem:[%s4 + $0x10] sm:$0xff] %v578
    %611 = vst [vmem:[%s4 + $0x18] sm:$0xff] %v579
    %612 = vst [vmem:[%s4 + $0x20] sm:$0xff] %v580
    %613 = vst [vmem:[%s4 + $0x28] sm:$0xff] %v581
    %614 = vst [vmem:[%s4 + $0x30] sm:$0xff] %v582
    %615 = vst [vmem:[%s4 + $0x38] sm:$0xff] %v583
    %616 = vst [vmem:[%s4 + $0x40] sm:$0xff] %v584
    %617 = vst [vmem:[%s4 + $0x48] sm:$0xff] %v585
    %618 = vst [vmem:[%s4 + $0x50] sm:$0xff] %v586
    %619 = vst [vmem:[%s4 + $0x58] sm:$0xff] %v587
    %620 = vst [vmem:[%s4 + $0x60] sm:$0xff] %v588
    %621 = vst [vmem:[%s4 + $0x68] sm:$0xff] %v589
    %622 = vst [vmem:[%s4 + $0x70] sm:$0xff] %v590
    %623 = vst [vmem:[%s4 + $0x78] sm:$0xff] %v591
  $region25: #{dmgin_forward.4} parent=0 // pred_fallthru
    _
  // Predicated region
  $region26: #{dmgin_forward.4} parent=0 // pred_check
    _
  $region27: #{dmgin_forward.4} parent=0 // pred_check_branch
    %625 = sbr.rel (0) target = $region29
  $region28: #{dmgin_forward.4} parent=0 // pred_region
    _
  $region29: #{dmgin_forward.4} parent=0 // pred_fallthru
    _
  // Predicated region
  $region30: #{dmgin_forward.4} parent=0 // pred_check
    _
  $region31: #{dmgin_forward.4} parent=0 // pred_check_branch
    %627 = sbr.rel (0) target = $region33
  $region32: #{dmgin_forward.4} parent=0 // pred_region
    _
  $region33: #{dmgin_forward.4} parent=0 // pred_fallthru
    _

// kernel: dmgin_forward.6
$region0: #{dmgin_forward.6}
  #allocation0 [shape = 'u32[]', space=smem, size = 0x4, offset = 0x4, fixed_abs, tag = 'smem constant byte address 0x4 - core index']
  #allocation1 [shape = 'u32[144,128]{1,0:T(1,128)}', space=vmem, size = 0x12000, scoped, tag = 'internal scratch']
  %s0 = inlined_call_operand.vmem [shape: bf16[128,256], index: 0, kind: input, shape index: {}]
  %s1 = inlined_call_operand.vmem [shape: bf16[256,128], index: 1, kind: input, shape index: {}]
  %s2 = inlined_call_operand.vmem [shape: bf16[128,128], index: 2, kind: output, shape index: {}]
  %s3 = sld [smem:[#allocation0]]
  $region18: #{dmgin_forward.6} parent=0
    _
  %s5 = ssub.s32 1, %s3
  %s6 = scalar_select 0, %s5, %s3
  // Predicated region
  $region2: #{dmgin_forward.6} parent=0 // pred_check
    _
  $region3: #{dmgin_forward.6} parent=0 // pred_check_branch
    %8 = sbr.rel (0) target = $region5
  $region4: #{dmgin_forward.6} parent=0 // pred_region
    _
  $region5: #{dmgin_forward.6} parent=0 // pred_fallthru
    _
  // Predicated region
  $region6: #{dmgin_forward.6} parent=0 // pred_check
    _
  $region7: #{dmgin_forward.6} parent=0 // pred_check_branch
    %10 = sbr.rel (0) target = $region9
  $region8: #{dmgin_forward.6} parent=0 // pred_region
    _
  $region9: #{dmgin_forward.6} parent=0 // pred_fallthru
    _
  %v12 = vld [vmem:[%s0] sm:$0xff]
  %v13 = vld [vmem:[%s0 + $0x8] sm:$0xff]
  %v14 = vld [vmem:[%s0 + $0x10] sm:$0xff]
  %v15 = vld [vmem:[%s0 + $0x18] sm:$0xff]
  %v16 = vld [vmem:[%s0 + $0x20] sm:$0xff]
  %v17 = vld [vmem:[%s0 + $0x28] sm:$0xff]
  %v18 = vld [vmem:[%s0 + $0x30] sm:$0xff]
  %v19 = vld [vmem:[%s0 + $0x38] sm:$0xff]
  %v20 = vld [vmem:[%s0 + $0x40] sm:$0xff]
  %v21 = vld [vmem:[%s0 + $0x48] sm:$0xff]
  %v22 = vld [vmem:[%s0 + $0x50] sm:$0xff]
  %v23 = vld [vmem:[%s0 + $0x58] sm:$0xff]
  %v24 = vld [vmem:[%s0 + $0x60] sm:$0xff]
  %v25 = vld [vmem:[%s0 + $0x68] sm:$0xff]
  %v26 = vld [vmem:[%s0 + $0x70] sm:$0xff]
  %v27 = vld [vmem:[%s0 + $0x78] sm:$0xff]
  %v28 = vld [vmem:[%s1] sm:$0xf]
  %v29 = vld [vmem:[%s1 + $0x4] sm:$0xf]
  %v30 = vld [vmem:[%s1 + $0x8] sm:$0xf]
  %v31 = vld [vmem:[%s1 + $0xc] sm:$0xf]
  %v32 = vld [vmem:[%s1 + $0x10] sm:$0xf]
  %v33 = vld [vmem:[%s1 + $0x14] sm:$0xf]
  %v34 = vld [vmem:[%s1 + $0x18] sm:$0xf]
  %v35 = vld [vmem:[%s1 + $0x1c] sm:$0xf]
  %v36 = vld [vmem:[%s1 + $0x20] sm:$0xf]
  %v37 = vld [vmem:[%s1 + $0x24] sm:$0xf]
  %v38 = vld [vmem:[%s1 + $0x28] sm:$0xf]
  %v39 = vld [vmem:[%s1 + $0x2c] sm:$0xf]
  %v40 = vld [vmem:[%s1 + $0x30] sm:$0xf]
  %v41 = vld [vmem:[%s1 + $0x34] sm:$0xf]
  %v42 = vld [vmem:[%s1 + $0x38] sm:$0xf]
  %v43 = vld [vmem:[%s1 + $0x3c] sm:$0xf]
  %v44 = vld [vmem:[%s1 + $0x40] sm:$0xf]
  %v45 = vld [vmem:[%s1 + $0x44] sm:$0xf]
  %v46 = vld [vmem:[%s1 + $0x48] sm:$0xf]
  %v47 = vld [vmem:[%s1 + $0x4c] sm:$0xf]
  %v48 = vld [vmem:[%s1 + $0x50] sm:$0xf]
  %v49 = vld [vmem:[%s1 + $0x54] sm:$0xf]
  %v50 = vld [vmem:[%s1 + $0x58] sm:$0xf]
  %v51 = vld [vmem:[%s1 + $0x5c] sm:$0xf]
  %v52 = vld [vmem:[%s1 + $0x60] sm:$0xf]
  %v53 = vld [vmem:[%s1 + $0x64] sm:$0xf]
  %v54 = vld [vmem:[%s1 + $0x68] sm:$0xf]
  %v55 = vld [vmem:[%s1 + $0x6c] sm:$0xf]
  %v56 = vld [vmem:[%s1 + $0x70] sm:$0xf]
  %v57 = vld [vmem:[%s1 + $0x74] sm:$0xf]
  %v58 = vld [vmem:[%s1 + $0x78] sm:$0xf]
  %v59 = vld [vmem:[%s1 + $0x7c] sm:$0xf]
  %v76 = vunpack.c.l.b16 %v12
  %v77 = vunpack.c.h.b16 %v12
  %v78 = vunpack.c.l.b16 %v13
  %v79 = vunpack.c.h.b16 %v13
  %v80 = vunpack.c.l.b16 %v14
  %v81 = vunpack.c.h.b16 %v14
  %v82 = vunpack.c.l.b16 %v15
  %v83 = vunpack.c.h.b16 %v15
  %v84 = vunpack.c.l.b16 %v16
  %v85 = vunpack.c.h.b16 %v16
  %v86 = vunpack.c.l.b16 %v17
  %v87 = vunpack.c.h.b16 %v17
  %v88 = vunpack.c.l.b16 %v18
  %v89 = vunpack.c.h.b16 %v18
  %v90 = vunpack.c.l.b16 %v19
  %v91 = vunpack.c.h.b16 %v19
  %v92 = vunpack.c.l.b16 %v20
  %v93 = vunpack.c.h.b16 %v20
  %v94 = vunpack.c.l.b16 %v21
  %v95 = vunpack.c.h.b16 %v21
  %v96 = vunpack.c.l.b16 %v22
  %v97 = vunpack.c.h.b16 %v22
  %v98 = vunpack.c.l.b16 %v23
  %v99 = vunpack.c.h.b16 %v23
  %v100 = vunpack.c.l.b16 %v24
  %v101 = vunpack.c.h.b16 %v24
  %v102 = vunpack.c.l.b16 %v25
  %v103 = vunpack.c.h.b16 %v25
  %v104 = vunpack.c.l.b16 %v26
  %v105 = vunpack.c.h.b16 %v26
  %v106 = vunpack.c.l.b16 %v27
  %v107 = vunpack.c.h.b16 %v27
  %v108 = vpack.c.b16 %v78, %v76
  %v109 = vpack.c.b16 %v79, %v77
  %v110 = vpack.c.b16 %v82, %v80
  %v111 = vpack.c.b16 %v83, %v81
  %v112 = vpack.c.b16 %v86, %v84
  %v113 = vpack.c.b16 %v87, %v85
  %v114 = vpack.c.b16 %v90, %v88
  %v115 = vpack.c.b16 %v91, %v89
  %v116 = vpack.c.b16 %v94, %v92
  %v117 = vpack.c.b16 %v95, %v93
  %v118 = vpack.c.b16 %v98, %v96
  %v119 = vpack.c.b16 %v99, %v97
  %v120 = vpack.c.b16 %v102, %v100
  %v121 = vpack.c.b16 %v103, %v101
  %v122 = vpack.c.b16 %v106, %v104
  %v123 = vpack.c.b16 %v107, %v105
  %v172 = vunpack.c.l.b16 %v28
  %v173 = vunpack.c.l.b16 %v29
  %v174 = vunpack.c.l.b16 %v30
  %v175 = vunpack.c.l.b16 %v31
  %v176 = vunpack.c.l.b16 %v32
  %v177 = vunpack.c.l.b16 %v33
  %v178 = vunpack.c.l.b16 %v34
  %v179 = vunpack.c.l.b16 %v35
  %v180 = vunpack.c.l.b16 %v36
  %v181 = vunpack.c.l.b16 %v37
  %v182 = vunpack.c.l.b16 %v38
  %v183 = vunpack.c.l.b16 %v39
  %v184 = vunpack.c.l.b16 %v40
  %v185 = vunpack.c.l.b16 %v41
  %v186 = vunpack.c.l.b16 %v42
  %v187 = vunpack.c.l.b16 %v43
  %v188 = vunpack.c.l.b16 %v44
  %v189 = vunpack.c.l.b16 %v45
  %v190 = vunpack.c.l.b16 %v46
  %v191 = vunpack.c.l.b16 %v47
  %v192 = vunpack.c.l.b16 %v48
  %v193 = vunpack.c.l.b16 %v49
  %v194 = vunpack.c.l.b16 %v50
  %v195 = vunpack.c.l.b16 %v51
  %v196 = vunpack.c.l.b16 %v52
  %v197 = vunpack.c.l.b16 %v53
  %v198 = vunpack.c.l.b16 %v54
  %v199 = vunpack.c.l.b16 %v55
  %v200 = vunpack.c.l.b16 %v56
  %v201 = vunpack.c.l.b16 %v57
  %v202 = vunpack.c.l.b16 %v58
  %v203 = vunpack.c.l.b16 %v59
  %v204 = vpack.c.b16 %v173, %v172
  %v205 = vpack.c.b16 %v175, %v174
  %v206 = vpack.c.b16 %v177, %v176
  %v207 = vpack.c.b16 %v179, %v178
  %v208 = vpack.c.b16 %v181, %v180
  %v209 = vpack.c.b16 %v183, %v182
  %v210 = vpack.c.b16 %v185, %v184
  %v211 = vpack.c.b16 %v187, %v186
  %v212 = vpack.c.b16 %v189, %v188
  %v213 = vpack.c.b16 %v191, %v190
  %v214 = vpack.c.b16 %v193, %v192
  %v215 = vpack.c.b16 %v195, %v194
  %v216 = vpack.c.b16 %v197, %v196
  %v217 = vpack.c.b16 %v199, %v198
  %v218 = vpack.c.b16 %v201, %v200
  %v219 = vpack.c.b16 %v203, %v202
  %236 = vmatprep.subr.bf16.mxu0 0
  %237 = vmatpush1.bf16.msra.mxu0 %v204
  %238 = vmatprep.subr.bf16.mxu0 0
  %239 = vmatpush1.bf16.msra.mxu0 %v205
  %240 = vmatprep.subr.bf16.mxu0 0
  %241 = vmatpush1.bf16.msra.mxu0 %v206
  %242 = vmatprep.subr.bf16.mxu0 0
  %243 = vmatpush1.bf16.msra.mxu0 %v207
  %244 = vmatprep.subr.bf16.mxu0 0
  %245 = vmatpush1.bf16.msra.mxu0 %v208
  %246 = vmatprep.subr.bf16.mxu0 0
  %247 = vmatpush1.bf16.msra.mxu0 %v209
  %248 = vmatprep.subr.bf16.mxu0 0
  %249 = vmatpush1.bf16.msra.mxu0 %v210
  %250 = vmatprep.subr.bf16.mxu0 0
  %251 = vmatpush1.bf16.msra.mxu0 %v211
  %252 = vmatprep.subr.bf16.mxu0 0
  %253 = vmatpush1.bf16.msra.mxu0 %v212
  %254 = vmatprep.subr.bf16.mxu0 0
  %255 = vmatpush1.bf16.msra.mxu0 %v213
  %256 = vmatprep.subr.bf16.mxu0 0
  %257 = vmatpush1.bf16.msra.mxu0 %v214
  %258 = vmatprep.subr.bf16.mxu0 0
  %259 = vmatpush1.bf16.msra.mxu0 %v215
  %260 = vmatprep.subr.bf16.mxu0 0
  %261 = vmatpush1.bf16.msra.mxu0 %v216
  %262 = vmatprep.subr.bf16.mxu0 0
  %263 = vmatpush1.bf16.msra.mxu0 %v217
  %264 = vmatprep.subr.bf16.mxu0 0
  %265 = vmatpush1.bf16.msra.mxu0 %v218
  %266 = vmatprep.subr.bf16.mxu0 0
  %267 = vmatpush1.bf16.msra.mxu0 %v219
  %268 = vmatprep.mubr.bf16.mxu0 %v109
  %269 = vmatmul.mubr.bf16.gmra.mrb[0].mxu0 %v108
  %v270 = vpop.f32.mrb[0].mxu0
  %v271 = vadd.f32 0.0, %v270
  %v272 = vpop.f32.mrb[0].mxu0
  %v273 = vpop.f32.mrb[0].mxu0
  %v274 = vadd.f32 0.0, %v273
  %v275 = vpop.f32.mrb[0].mxu0
  %276 = vmatprep.mubr.bf16.mxu0 %v111
  %277 = vmatmul.mubr.bf16.gmra.mrb[0].mxu0 %v110
  %v278 = vpop.f32.mrb[0].mxu0
  %v279 = vadd.f32 0.0, %v278
  %v280 = vpop.f32.mrb[0].mxu0
  %v281 = vpop.f32.mrb[0].mxu0
  %v282 = vadd.f32 0.0, %v281
  %v283 = vpop.f32.mrb[0].mxu0
  %284 = vmatprep.mubr.bf16.mxu0 %v113
  %285 = vmatmul.mubr.bf16.gmra.mrb[0].mxu0 %v112
  %v286 = vpop.f32.mrb[0].mxu0
  %v287 = vadd.f32 0.0, %v286
  %v288 = vpop.f32.mrb[0].mxu0
  %v289 = vpop.f32.mrb[0].mxu0
  %v290 = vadd.f32 0.0, %v289
  %v291 = vpop.f32.mrb[0].mxu0
  %292 = vmatprep.mubr.bf16.mxu0 %v115
  %293 = vmatmul.mubr.bf16.gmra.mrb[0].mxu0 %v114
  %v294 = vpop.f32.mrb[0].mxu0
  %v295 = vadd.f32 0.0, %v294
  %v296 = vpop.f32.mrb[0].mxu0
  %v297 = vpop.f32.mrb[0].mxu0
  %v298 = vadd.f32 0.0, %v297
  %v299 = vpop.f32.mrb[0].mxu0
  %300 = vmatprep.mubr.bf16.mxu0 %v117
  %301 = vmatmul.mubr.bf16.gmra.mrb[0].mxu0 %v116
  %v302 = vpop.f32.mrb[0].mxu0
  %v303 = vadd.f32 0.0, %v302
  %v304 = vpop.f32.mrb[0].mxu0
  %v305 = vpop.f32.mrb[0].mxu0
  %v306 = vadd.f32 0.0, %v305
  %v307 = vpop.f32.mrb[0].mxu0
  %308 = vmatprep.mubr.bf16.mxu0 %v119
  %309 = vmatmul.mubr.bf16.gmra.mrb[0].mxu0 %v118
  %v310 = vpop.f32.mrb[0].mxu0
  %v311 = vadd.f32 0.0, %v310
  %v312 = vpop.f32.mrb[0].mxu0
  %v313 = vpop.f32.mrb[0].mxu0
  %v314 = vadd.f32 0.0, %v313
  %v315 = vpop.f32.mrb[0].mxu0
  %316 = vmatprep.mubr.bf16.mxu0 %v121
  %317 = vmatmul.mubr.bf16.gmra.mrb[0].mxu0 %v120
  %v318 = vpop.f32.mrb[0].mxu0
  %v319 = vadd.f32 0.0, %v318
  %v320 = vpop.f32.mrb[0].mxu0
  %v321 = vpop.f32.mrb[0].mxu0
  %v322 = vadd.f32 0.0, %v321
  %v323 = vpop.f32.mrb[0].mxu0
  %324 = vmatprep.mubr.bf16.mxu0 %v123
  %325 = vmatmul.mubr.bf16.gmra.mrb[0].mxu0 %v122
  %v326 = vpop.f32.mrb[0].mxu0
  %v327 = vadd.f32 0.0, %v326
  %v328 = vpop.f32.mrb[0].mxu0
  %v329 = vpop.f32.mrb[0].mxu0
  %v330 = vadd.f32 0.0, %v329
  %v331 = vpop.f32.mrb[0].mxu0
  %332 = vdwg.mxu0
  %v333 = vpack.c.bf16 %v274, %v271
  %v334 = vpack.c.bf16 %v282, %v279
  %v335 = vpack.c.bf16 %v290, %v287
  %v336 = vpack.c.bf16 %v298, %v295
  %v337 = vpack.c.bf16 %v306, %v303
  %v338 = vpack.c.bf16 %v314, %v311
  %v339 = vpack.c.bf16 %v322, %v319
  %v340 = vpack.c.bf16 %v330, %v327
  %v349 = vunpack.c.l.b16 %v333
  %v350 = vunpack.c.h.b16 %v333
  %v351 = vunpack.c.l.b16 %v334
  %v352 = vunpack.c.h.b16 %v334
  %v353 = vunpack.c.l.b16 %v335
  %v354 = vunpack.c.h.b16 %v335
  %v355 = vunpack.c.l.b16 %v336
  %v356 = vunpack.c.h.b16 %v336
  %v357 = vunpack.c.l.b16 %v337
  %v358 = vunpack.c.h.b16 %v337
  %v359 = vunpack.c.l.b16 %v338
  %v360 = vunpack.c.h.b16 %v338
  %v361 = vunpack.c.l.b16 %v339
  %v362 = vunpack.c.h.b16 %v339
  %v363 = vunpack.c.l.b16 %v340
  %v364 = vunpack.c.h.b16 %v340
  %v365 = vpack.c.b16 %v349, %v349
  %v366 = vpack.c.b16 %v350, %v350
  %v367 = vpack.c.b16 %v351, %v351
  %v368 = vpack.c.b16 %v352, %v352
  %v369 = vpack.c.b16 %v353, %v353
  %v370 = vpack.c.b16 %v354, %v354
  %v371 = vpack.c.b16 %v355, %v355
  %v372 = vpack.c.b16 %v356, %v356
  %v373 = vpack.c.b16 %v357, %v357
  %v374 = vpack.c.b16 %v358, %v358
  %v375 = vpack.c.b16 %v359, %v359
  %v376 = vpack.c.b16 %v360, %v360
  %v377 = vpack.c.b16 %v361, %v361
  %v378 = vpack.c.b16 %v362, %v362
  %v379 = vpack.c.b16 %v363, %v363
  %v380 = vpack.c.b16 %v364, %v364
  %397 = vst [vmem:[%s2] sm:$0xf] %v365
  %398 = vst [vmem:[%s2 + $0x4] sm:$0xf] %v366
  %399 = vst [vmem:[%s2 + $0x8] sm:$0xf] %v367
  %400 = vst [vmem:[%s2 + $0xc] sm:$0xf] %v368
  %401 = vst [vmem:[%s2 + $0x10] sm:$0xf] %v369
  %402 = vst [vmem:[%s2 + $0x14] sm:$0xf] %v370
  %403 = vst [vmem:[%s2 + $0x18] sm:$0xf] %v371
  %404 = vst [vmem:[%s2 + $0x1c] sm:$0xf] %v372
  %405 = vst [vmem:[%s2 + $0x20] sm:$0xf] %v373
  %406 = vst [vmem:[%s2 + $0x24] sm:$0xf] %v374
  %407 = vst [vmem:[%s2 + $0x28] sm:$0xf] %v375
  %408 = vst [vmem:[%s2 + $0x2c] sm:$0xf] %v376
  %409 = vst [vmem:[%s2 + $0x30] sm:$0xf] %v377
  %410 = vst [vmem:[%s2 + $0x34] sm:$0xf] %v378
  %411 = vst [vmem:[%s2 + $0x38] sm:$0xf] %v379
  %412 = vst [vmem:[%s2 + $0x3c] sm:$0xf] %v380
  // Predicated region
  $region10: #{dmgin_forward.6} parent=0 // pred_check
    _
  $region11: #{dmgin_forward.6} parent=0 // pred_check_branch
    %414 = sbr.rel (0) target = $region13
  $region12: #{dmgin_forward.6} parent=0 // pred_region
    _
  $region13: #{dmgin_forward.6} parent=0 // pred_fallthru
    _
  // Predicated region
  $region14: #{dmgin_forward.6} parent=0 // pred_check
    _
  $region15: #{dmgin_forward.6} parent=0 // pred_check_branch
    %416 = sbr.rel (0) target = $region17
  $region16: #{dmgin_forward.6} parent=0 // pred_region
    _
  $region17: #{dmgin_forward.6} parent=0 // pred_fallthru
    _

// kernel: dmgin_forward.7
$region0: #{dmgin_forward.7}
  #allocation0 [shape = 'u32[]', space=smem, size = 0x4, offset = 0x4, fixed_abs, tag = 'smem constant byte address 0x4 - core index']
  #allocation1 [shape = 'u32[144,128]{1,0:T(1,128)}', space=vmem, size = 0x12000, scoped, tag = 'internal scratch']
  #allocation2 [shape = 'f32[128,128]{1,0:T(8,128)}', space=vmem, size = 0x10000, scoped, tag = 'scratch operand']
  %s0 = inlined_call_operand.vmem [shape: s8[128,128], index: 0, kind: input, shape index: {}]
  %s1 = inlined_call_operand.vmem [shape: bf16[128,128], index: 1, kind: input, shape index: {}]
  %s2 = inlined_call_operand.vmem [shape: f32[1,128], index: 2, kind: input, shape index: {}]
  %s3 = inlined_call_operand.vmem [shape: f32[128,128], index: 3, kind: output, shape index: {}]
  %s4 = sld [smem:[#allocation0]]
  $region30: #{dmgin_forward.7} parent=0
    _
  %s6 = ssub.s32 1, %s4
  %s7 = scalar_select 0, %s6, %s4
  // Predicated region
  $region2: #{dmgin_forward.7} parent=0 // pred_check
    _
  $region3: #{dmgin_forward.7} parent=0 // pred_check_branch
    %9 = sbr.rel (0) target = $region5
  $region4: #{dmgin_forward.7} parent=0 // pred_region
    _
  $region5: #{dmgin_forward.7} parent=0 // pred_fallthru
    _
  // Predicated region
  $region6: #{dmgin_forward.7} parent=0 // pred_check
    _
  $region7: #{dmgin_forward.7} parent=0 // pred_check_branch
    %11 = sbr.rel (0) target = $region9
  $region8: #{dmgin_forward.7} parent=0 // pred_region
    _
  $region9: #{dmgin_forward.7} parent=0 // pred_fallthru
    _
  // Predicated region
  $region10: #{dmgin_forward.7} parent=0 // pred_check
    _
  $region11: #{dmgin_forward.7} parent=0 // pred_check_branch
    %13 = sbr.rel (0) target = $region13
  $region12: #{dmgin_forward.7} parent=0 // pred_region
    _
  $region13: #{dmgin_forward.7} parent=0 // pred_fallthru
    _
  %p15 = scmp.eq.s32.totalorder 0, 0
  // Predicated region
  $region14: #{dmgin_forward.7} parent=0 // pred_check
    %p16 = pneg %p15
  $region15: #{dmgin_forward.7} parent=0 // pred_check_branch
    %18 = sbr.rel (%p16) target = $region17
  $region16: #{dmgin_forward.7} parent=0 // pred_region
    %19 = vst [vmem:[#allocation2] sm:$0xff] 0.0
    %20 = vst [vmem:[#allocation2 + $0x8] sm:$0xff] 0.0
    %21 = vst [vmem:[#allocation2 + $0x10] sm:$0xff] 0.0
    %22 = vst [vmem:[#allocation2 + $0x18] sm:$0xff] 0.0
    %23 = vst [vmem:[#allocation2 + $0x20] sm:$0xff] 0.0
    %24 = vst [vmem:[#allocation2 + $0x28] sm:$0xff] 0.0
    %25 = vst [vmem:[#allocation2 + $0x30] sm:$0xff] 0.0
    %26 = vst [vmem:[#allocation2 + $0x38] sm:$0xff] 0.0
    %27 = vst [vmem:[#allocation2 + $0x40] sm:$0xff] 0.0
    %28 = vst [vmem:[#allocation2 + $0x48] sm:$0xff] 0.0
    %29 = vst [vmem:[#allocation2 + $0x50] sm:$0xff] 0.0
    %30 = vst [vmem:[#allocation2 + $0x58] sm:$0xff] 0.0
    %31 = vst [vmem:[#allocation2 + $0x60] sm:$0xff] 0.0
    %32 = vst [vmem:[#allocation2 + $0x68] sm:$0xff] 0.0
    %33 = vst [vmem:[#allocation2 + $0x70] sm:$0xff] 0.0
    %34 = vst [vmem:[#allocation2 + $0x78] sm:$0xff] 0.0
  $region17: #{dmgin_forward.7} parent=0 // pred_fallthru
    _
  %v35 = vld [vmem:[%s0] sm:$0xff]
  %v36 = vld [vmem:[%s0 + $0x8] sm:$0xff]
  %v37 = vld [vmem:[%s0 + $0x10] sm:$0xff]
  %v38 = vld [vmem:[%s0 + $0x18] sm:$0xff]
  %v39 = vunpack.c.l.s8.bf16 %v35
  %v40 = vunpack.c.h.s8.bf16 %v35
  %v41 = vunpack.c.l.s8.bf16 %v36
  %v42 = vunpack.c.h.s8.bf16 %v36
  %v43 = vunpack.c.l.s8.bf16 %v37
  %v44 = vunpack.c.h.s8.bf16 %v37
  %v45 = vunpack.c.l.s8.bf16 %v38
  %v46 = vunpack.c.h.s8.bf16 %v38
  %s47 = smul.u32 0, 128
  %s48 = sshra.s32 %s47, 3
  %s49 = sand.u32 %s47, 7
  %s50 = smul.addr %s48, 4
  %s51 = scalar_lea.vmem %s1, %s50
  %v52 = vld [vmem:[%s51] sm:$0xf]
  %v53 = vld [vmem:[%s51 + $0x4] sm:$0xf]
  %v54 = vld [vmem:[%s51 + $0x8] sm:$0xf]
  %v55 = vld [vmem:[%s51 + $0xc] sm:$0xf]
  %v56 = vld [vmem:[%s51 + $0x10] sm:$0xf]
  %v57 = vld [vmem:[%s51 + $0x14] sm:$0xf]
  %v58 = vld [vmem:[%s51 + $0x18] sm:$0xf]
  %v59 = vld [vmem:[%s51 + $0x1c] sm:$0xf]
  %v60 = vld [vmem:[%s51 + $0x20] sm:$0xf]
  %v61 = vld [vmem:[%s51 + $0x24] sm:$0xf]
  %v62 = vld [vmem:[%s51 + $0x28] sm:$0xf]
  %v63 = vld [vmem:[%s51 + $0x2c] sm:$0xf]
  %v64 = vld [vmem:[%s51 + $0x30] sm:$0xf]
  %v65 = vld [vmem:[%s51 + $0x34] sm:$0xf]
  %v66 = vld [vmem:[%s51 + $0x38] sm:$0xf]
  %v67 = vld [vmem:[%s51 + $0x3c] sm:$0xf]
  %v68 = vld [vmem:[#allocation2] sm:$0xff]
  %v69 = vld [vmem:[#allocation2 + $0x8] sm:$0xff]
  %v70 = vld [vmem:[#allocation2 + $0x10] sm:$0xff]
  %v71 = vld [vmem:[#allocation2 + $0x18] sm:$0xff]
  %v72 = vld [vmem:[#allocation2 + $0x20] sm:$0xff]
  %v73 = vld [vmem:[#allocation2 + $0x28] sm:$0xff]
  %v74 = vld [vmem:[#allocation2 + $0x30] sm:$0xff]
  %v75 = vld [vmem:[#allocation2 + $0x38] sm:$0xff]
  %v76 = vld [vmem:[#allocation2 + $0x40] sm:$0xff]
  %v77 = vld [vmem:[#allocation2 + $0x48] sm:$0xff]
  %v78 = vld [vmem:[#allocation2 + $0x50] sm:$0xff]
  %v79 = vld [vmem:[#allocation2 + $0x58] sm:$0xff]
  %v80 = vld [vmem:[#allocation2 + $0x60] sm:$0xff]
  %v81 = vld [vmem:[#allocation2 + $0x68] sm:$0xff]
  %v82 = vld [vmem:[#allocation2 + $0x70] sm:$0xff]
  %v83 = vld [vmem:[#allocation2 + $0x78] sm:$0xff]
  %v100 = vunpack.c.l.b16 %v52
  %v101 = vunpack.c.l.b16 %v53
  %v102 = vunpack.c.l.b16 %v54
  %v103 = vunpack.c.l.b16 %v55
  %v104 = vunpack.c.l.b16 %v56
  %v105 = vunpack.c.l.b16 %v57
  %v106 = vunpack.c.l.b16 %v58
  %v107 = vunpack.c.l.b16 %v59
  %v108 = vunpack.c.l.b16 %v60
  %v109 = vunpack.c.l.b16 %v61
  %v110 = vunpack.c.l.b16 %v62
  %v111 = vunpack.c.l.b16 %v63
  %v112 = vunpack.c.l.b16 %v64
  %v113 = vunpack.c.l.b16 %v65
  %v114 = vunpack.c.l.b16 %v66
  %v115 = vunpack.c.l.b16 %v67
  %v116 = vpack.c.b16 %v101, %v100
  %v117 = vpack.c.b16 %v103, %v102
  %v118 = vpack.c.b16 %v105, %v104
  %v119 = vpack.c.b16 %v107, %v106
  %v120 = vpack.c.b16 %v109, %v108
  %v121 = vpack.c.b16 %v111, %v110
  %v122 = vpack.c.b16 %v113, %v112
  %v123 = vpack.c.b16 %v115, %v114
  %132 = vmatprep.subr.bf16.mxu0 0
  %133 = vmatpush1.bf16.msra.mxu0 %v116
  %134 = vmatprep.subr.bf16.mxu0 0
  %135 = vmatpush1.bf16.msra.mxu0 %v117
  %136 = vmatprep.subr.bf16.mxu0 0
  %137 = vmatpush1.bf16.msra.mxu0 %v118
  %138 = vmatprep.subr.bf16.mxu0 0
  %139 = vmatpush1.bf16.msra.mxu0 %v119
  %140 = vmatprep.subr.bf16.mxu0 0
  %141 = vmatpush1.bf16.msra.mxu0 %v120
  %142 = vmatprep.subr.bf16.mxu0 0
  %143 = vmatpush1.bf16.msra.mxu0 %v121
  %144 = vmatprep.subr.bf16.mxu0 0
  %145 = vmatpush1.bf16.msra.mxu0 %v122
  %146 = vmatprep.subr.bf16.mxu0 0
  %147 = vmatpush1.bf16.msra.mxu0 %v123
  %148 = vmatprep.subr.bf16.mxu0 0
  %149 = vmatpush1.bf16.msra.mxu0 0
  %150 = vmatprep.subr.bf16.mxu0 0
  %151 = vmatpush1.bf16.msra.mxu0 0
  %152 = vmatprep.subr.bf16.mxu0 0
  %153 = vmatpush1.bf16.msra.mxu0 0
  %154 = vmatprep.subr.bf16.mxu0 0
  %155 = vmatpush1.bf16.msra.mxu0 0
  %156 = vmatprep.subr.bf16.mxu0 0
  %157 = vmatpush1.bf16.msra.mxu0 0
  %158 = vmatprep.subr.bf16.mxu0 0
  %159 = vmatpush1.bf16.msra.mxu0 0
  %160 = vmatprep.subr.bf16.mxu0 0
  %161 = vmatpush1.bf16.msra.mxu0 0
  %162 = vmatprep.subr.bf16.mxu0 0
  %163 = vmatpush1.bf16.msra.mxu0 0
  %164 = vmatprep.mubr.bf16.mxu0 0
  %165 = vmatmul.mubr.bf16.gmra.mrb[0].mxu0 %v39
  %v166 = vpop.f32.mrb[0].mxu0
  %v167 = vadd.f32 0.0, %v166
  %v168 = vpop.f32.mrb[0].mxu0
  %v169 = vpop.f32.mrb[0].mxu0
  %v170 = vadd.f32 0.0, %v169
  %v171 = vpop.f32.mrb[0].mxu0
  %172 = vmatprep.mubr.bf16.mxu0 0
  %173 = vmatmul.mubr.bf16.gmra.mrb[0].mxu0 %v40
  %v174 = vpop.f32.mrb[0].mxu0
  %v175 = vadd.f32 0.0, %v174
  %v176 = vpop.f32.mrb[0].mxu0
  %v177 = vpop.f32.mrb[0].mxu0
  %v178 = vadd.f32 0.0, %v177
  %v179 = vpop.f32.mrb[0].mxu0
  %180 = vmatprep.mubr.bf16.mxu0 0
  %181 = vmatmul.mubr.bf16.gmra.mrb[0].mxu0 %v41
  %v182 = vpop.f32.mrb[0].mxu0
  %v183 = vadd.f32 0.0, %v182
  %v184 = vpop.f32.mrb[0].mxu0
  %v185 = vpop.f32.mrb[0].mxu0
  %v186 = vadd.f32 0.0, %v185
  %v187 = vpop.f32.mrb[0].mxu0
  %188 = vmatprep.mubr.bf16.mxu0 0
  %189 = vmatmul.mubr.bf16.gmra.mrb[0].mxu0 %v42
  %v190 = vpop.f32.mrb[0].mxu0
  %v191 = vadd.f32 0.0, %v190
  %v192 = vpop.f32.mrb[0].mxu0
  %v193 = vpop.f32.mrb[0].mxu0
  %v194 = vadd.f32 0.0, %v193
  %v195 = vpop.f32.mrb[0].mxu0
  %196 = vmatprep.mubr.bf16.mxu0 0
  %197 = vmatmul.mubr.bf16.gmra.mrb[0].mxu0 %v43
  %v198 = vpop.f32.mrb[0].mxu0
  %v199 = vadd.f32 0.0, %v198
  %v200 = vpop.f32.mrb[0].mxu0
  %v201 = vpop.f32.mrb[0].mxu0
  %v202 = vadd.f32 0.0, %v201
  %v203 = vpop.f32.mrb[0].mxu0
  %204 = vmatprep.mubr.bf16.mxu0 0
  %205 = vmatmul.mubr.bf16.gmra.mrb[0].mxu0 %v44
  %v206 = vpop.f32.mrb[0].mxu0
  %v207 = vadd.f32 0.0, %v206
  %v208 = vpop.f32.mrb[0].mxu0
  %v209 = vpop.f32.mrb[0].mxu0
  %v210 = vadd.f32 0.0, %v209
  %v211 = vpop.f32.mrb[0].mxu0
  %212 = vmatprep.mubr.bf16.mxu0 0
  %213 = vmatmul.mubr.bf16.gmra.mrb[0].mxu0 %v45
  %v214 = vpop.f32.mrb[0].mxu0
  %v215 = vadd.f32 0.0, %v214
  %v216 = vpop.f32.mrb[0].mxu0
  %v217 = vpop.f32.mrb[0].mxu0
  %v218 = vadd.f32 0.0, %v217
  %v219 = vpop.f32.mrb[0].mxu0
  %220 = vmatprep.mubr.bf16.mxu0 0
  %221 = vmatmul.mubr.bf16.gmra.mrb[0].mxu0 %v46
  %v222 = vpop.f32.mrb[0].mxu0
  %v223 = vadd.f32 0.0, %v222
  %v224 = vpop.f32.mrb[0].mxu0
  %v225 = vpop.f32.mrb[0].mxu0
  %v226 = vadd.f32 0.0, %v225
  %v227 = vpop.f32.mrb[0].mxu0
  %228 = vdwg.mxu0
  %v229 = vadd.f32 %v68, %v167
  %v230 = vadd.f32 %v69, %v170
  %v231 = vadd.f32 %v70, %v175
  %v232 = vadd.f32 %v71, %v178
  %v233 = vadd.f32 %v72, %v183
  %v234 = vadd.f32 %v73, %v186
  %v235 = vadd.f32 %v74, %v191
  %v236 = vadd.f32 %v75, %v194
  %v237 = vadd.f32 %v76, %v199
  %v238 = vadd.f32 %v77, %v202
  %v239 = vadd.f32 %v78, %v207
  %v240 = vadd.f32 %v79, %v210
  %v241 = vadd.f32 %v80, %v215
  %v242 = vadd.f32 %v81, %v218
  %v243 = vadd.f32 %v82, %v223
  %v244 = vadd.f32 %v83, %v226
  %245 = vst [vmem:[#allocation2] sm:$0xff] %v229
  %246 = vst [vmem:[#allocation2 + $0x8] sm:$0xff] %v230
  %247 = vst [vmem:[#allocation2 + $0x10] sm:$0xff] %v231
  %248 = vst [vmem:[#allocation2 + $0x18] sm:$0xff] %v232
  %249 = vst [vmem:[#allocation2 + $0x20] sm:$0xff] %v233
  %250 = vst [vmem:[#allocation2 + $0x28] sm:$0xff] %v234
  %251 = vst [vmem:[#allocation2 + $0x30] sm:$0xff] %v235
  %252 = vst [vmem:[#allocation2 + $0x38] sm:$0xff] %v236
  %253 = vst [vmem:[#allocation2 + $0x40] sm:$0xff] %v237
  %254 = vst [vmem:[#allocation2 + $0x48] sm:$0xff] %v238
  %255 = vst [vmem:[#allocation2 + $0x50] sm:$0xff] %v239
  %256 = vst [vmem:[#allocation2 + $0x58] sm:$0xff] %v240
  %257 = vst [vmem:[#allocation2 + $0x60] sm:$0xff] %v241
  %258 = vst [vmem:[#allocation2 + $0x68] sm:$0xff] %v242
  %259 = vst [vmem:[#allocation2 + $0x70] sm:$0xff] %v243
  %260 = vst [vmem:[#allocation2 + $0x78] sm:$0xff] %v244
  // Predicated region
  $region18: #{dmgin_forward.7} parent=0 // pred_check
    %p261 = pneg %p15
  $region19: #{dmgin_forward.7} parent=0 // pred_check_branch
    %263 = sbr.rel (%p261) target = $region21
  $region20: #{dmgin_forward.7} parent=0 // pred_region
    %v264 = vld [vmem:[#allocation2] sm:$0xff]
    %v265 = vld [vmem:[#allocation2 + $0x8] sm:$0xff]
    %v266 = vld [vmem:[#allocation2 + $0x10] sm:$0xff]
    %v267 = vld [vmem:[#allocation2 + $0x18] sm:$0xff]
    %v268 = vld [vmem:[#allocation2 + $0x20] sm:$0xff]
    %v269 = vld [vmem:[#allocation2 + $0x28] sm:$0xff]
    %v270 = vld [vmem:[#allocation2 + $0x30] sm:$0xff]
    %v271 = vld [vmem:[#allocation2 + $0x38] sm:$0xff]
    %v272 = vld [vmem:[#allocation2 + $0x40] sm:$0xff]
    %v273 = vld [vmem:[#allocation2 + $0x48] sm:$0xff]
    %v274 = vld [vmem:[#allocation2 + $0x50] sm:$0xff]
    %v275 = vld [vmem:[#allocation2 + $0x58] sm:$0xff]
    %v276 = vld [vmem:[#allocation2 + $0x60] sm:$0xff]
    %v277 = vld [vmem:[#allocation2 + $0x68] sm:$0xff]
    %v278 = vld [vmem:[#allocation2 + $0x70] sm:$0xff]
    %v279 = vld [vmem:[#allocation2 + $0x78] sm:$0xff]
    %v280 = vld [vmem:[%s2] sm:$0x1]
    %v282 = vlaneseq
    %v283 = vshrl.u32 %v282, 7
    %v284 = vsub.s32 0, %v283
    %v285 = vrot.slane %v280, %v284
    %v287 = vadd.f32 %v264, %v285
    %v288 = vadd.f32 %v265, %v285
    %v289 = vadd.f32 %v266, %v285
    %v290 = vadd.f32 %v267, %v285
    %v291 = vadd.f32 %v268, %v285
    %v292 = vadd.f32 %v269, %v285
    %v293 = vadd.f32 %v270, %v285
    %v294 = vadd.f32 %v271, %v285
    %v295 = vadd.f32 %v272, %v285
    %v296 = vadd.f32 %v273, %v285
    %v297 = vadd.f32 %v274, %v285
    %v298 = vadd.f32 %v275, %v285
    %v299 = vadd.f32 %v276, %v285
    %v300 = vadd.f32 %v277, %v285
    %v301 = vadd.f32 %v278, %v285
    %v302 = vadd.f32 %v279, %v285
    %303 = vst [vmem:[%s3] sm:$0xff] %v287
    %304 = vst [vmem:[%s3 + $0x8] sm:$0xff] %v288
    %305 = vst [vmem:[%s3 + $0x10] sm:$0xff] %v289
    %306 = vst [vmem:[%s3 + $0x18] sm:$0xff] %v290
    %307 = vst [vmem:[%s3 + $0x20] sm:$0xff] %v291
    %308 = vst [vmem:[%s3 + $0x28] sm:$0xff] %v292
    %309 = vst [vmem:[%s3 + $0x30] sm:$0xff] %v293
    %310 = vst [vmem:[%s3 + $0x38] sm:$0xff] %v294
    %311 = vst [vmem:[%s3 + $0x40] sm:$0xff] %v295
    %312 = vst [vmem:[%s3 + $0x48] sm:$0xff] %v296
    %313 = vst [vmem:[%s3 + $0x50] sm:$0xff] %v297
    %314 = vst [vmem:[%s3 + $0x58] sm:$0xff] %v298
    %315 = vst [vmem:[%s3 + $0x60] sm:$0xff] %v299
    %316 = vst [vmem:[%s3 + $0x68] sm:$0xff] %v300
    %317 = vst [vmem:[%s3 + $0x70] sm:$0xff] %v301
    %318 = vst [vmem:[%s3 + $0x78] sm:$0xff] %v302
  $region21: #{dmgin_forward.7} parent=0 // pred_fallthru
    _
  // Predicated region
  $region22: #{dmgin_forward.7} parent=0 // pred_check
    _
  $region23: #{dmgin_forward.7} parent=0 // pred_check_branch
    %320 = sbr.rel (0) target = $region25
  $region24: #{dmgin_forward.7} parent=0 // pred_region
    _
  $region25: #{dmgin_forward.7} parent=0 // pred_fallthru
    _
  // Predicated region
  $region26: #{dmgin_forward.7} parent=0 // pred_check
    _
  $region27: #{dmgin_forward.7} parent=0 // pred_check_branch
    %322 = sbr.rel (0) target = $region29
  $region28: #{dmgin_forward.7} parent=0 // pred_region
    _
  $region29: #{dmgin_forward.7} parent=0 // pred_fallthru
    _

// kernel: dmgin_forward.5
$region0: #{dmgin_forward.5}
  #allocation0 [shape = 'u32[]', space=smem, size = 0x4, offset = 0x4, fixed_abs, tag = 'smem constant byte address 0x4 - core index']
  #allocation1 [shape = 'u32[144,128]{1,0:T(1,128)}', space=vmem, size = 0x12000, scoped, tag = 'internal scratch']
  #allocation2 [shape = 'f32[128,256]{1,0:T(8,128)}', space=vmem, size = 0x20000, scoped, tag = 'scratch operand']
  %s0 = inlined_call_operand.vmem [shape: s8[128,128], index: 0, kind: input, shape index: {}]
  %s1 = inlined_call_operand.vmem [shape: bf16[128,256], index: 1, kind: input, shape index: {}]
  %s2 = inlined_call_operand.vmem [shape: bf16[256,256], index: 2, kind: input, shape index: {}]
  %s3 = inlined_call_operand.vmem [shape: f32[1,256], index: 3, kind: input, shape index: {}]
  %s4 = inlined_call_operand.vmem [shape: bf16[128,256], index: 4, kind: output, shape index: {}]
  %s5 = sld [smem:[#allocation0]]
  $region34: #{dmgin_forward.5} parent=0
    _
  %s7 = ssub.s32 1, %s5
  %s8 = scalar_select 0, %s7, %s5
  // Predicated region
  $region2: #{dmgin_forward.5} parent=0 // pred_check
    _
  $region3: #{dmgin_forward.5} parent=0 // pred_check_branch
    %10 = sbr.rel (0) target = $region5
  $region4: #{dmgin_forward.5} parent=0 // pred_region
    _
  $region5: #{dmgin_forward.5} parent=0 // pred_fallthru
    _
  // Predicated region
  $region6: #{dmgin_forward.5} parent=0 // pred_check
    _
  $region7: #{dmgin_forward.5} parent=0 // pred_check_branch
    %12 = sbr.rel (0) target = $region9
  $region8: #{dmgin_forward.5} parent=0 // pred_region
    _
  $region9: #{dmgin_forward.5} parent=0 // pred_fallthru
    _
  // Predicated region
  $region10: #{dmgin_forward.5} parent=0 // pred_check
    _
  $region11: #{dmgin_forward.5} parent=0 // pred_check_branch
    %14 = sbr.rel (0) target = $region13
  $region12: #{dmgin_forward.5} parent=0 // pred_region
    _
  $region13: #{dmgin_forward.5} parent=0 // pred_fallthru
    _
  // Predicated region
  $region14: #{dmgin_forward.5} parent=0 // pred_check
    _
  $region15: #{dmgin_forward.5} parent=0 // pred_check_branch
    %16 = sbr.rel (0) target = $region17
  $region16: #{dmgin_forward.5} parent=0 // pred_region
    _
  $region17: #{dmgin_forward.5} parent=0 // pred_fallthru
    _
  %p18 = scmp.eq.s32.totalorder 0, 0
  // Predicated region
  $region18: #{dmgin_forward.5} parent=0 // pred_check
    %p19 = pneg %p18
  $region19: #{dmgin_forward.5} parent=0 // pred_check_branch
    %21 = sbr.rel (%p19) target = $region21
  $region20: #{dmgin_forward.5} parent=0 // pred_region
    %22 = vst [vmem:[#allocation2] sm:$0xff] 0.0
    %23 = vst [vmem:[#allocation2 + $0x8] sm:$0xff] 0.0
    %24 = vst [vmem:[#allocation2 + $0x10] sm:$0xff] 0.0
    %25 = vst [vmem:[#allocation2 + $0x18] sm:$0xff] 0.0
    %26 = vst [vmem:[#allocation2 + $0x20] sm:$0xff] 0.0
    %27 = vst [vmem:[#allocation2 + $0x28] sm:$0xff] 0.0
    %28 = vst [vmem:[#allocation2 + $0x30] sm:$0xff] 0.0
    %29 = vst [vmem:[#allocation2 + $0x38] sm:$0xff] 0.0
    %30 = vst [vmem:[#allocation2 + $0x40] sm:$0xff] 0.0
    %31 = vst [vmem:[#allocation2 + $0x48] sm:$0xff] 0.0
    %32 = vst [vmem:[#allocation2 + $0x50] sm:$0xff] 0.0
    %33 = vst [vmem:[#allocation2 + $0x58] sm:$0xff] 0.0
    %34 = vst [vmem:[#allocation2 + $0x60] sm:$0xff] 0.0
    %35 = vst [vmem:[#allocation2 + $0x68] sm:$0xff] 0.0
    %36 = vst [vmem:[#allocation2 + $0x70] sm:$0xff] 0.0
    %37 = vst [vmem:[#allocation2 + $0x78] sm:$0xff] 0.0
    %38 = vst [vmem:[#allocation2 + $0x80] sm:$0xff] 0.0
    %39 = vst [vmem:[#allocation2 + $0x88] sm:$0xff] 0.0
    %40 = vst [vmem:[#allocation2 + $0x90] sm:$0xff] 0.0
    %41 = vst [vmem:[#allocation2 + $0x98] sm:$0xff] 0.0
    %42 = vst [vmem:[#allocation2 + $0xa0] sm:$0xff] 0.0
    %43 = vst [vmem:[#allocation2 + $0xa8] sm:$0xff] 0.0
    %44 = vst [vmem:[#allocation2 + $0xb0] sm:$0xff] 0.0
    %45 = vst [vmem:[#allocation2 + $0xb8] sm:$0xff] 0.0
    %46 = vst [vmem:[#allocation2 + $0xc0] sm:$0xff] 0.0
    %47 = vst [vmem:[#allocation2 + $0xc8] sm:$0xff] 0.0
    %48 = vst [vmem:[#allocation2 + $0xd0] sm:$0xff] 0.0
    %49 = vst [vmem:[#allocation2 + $0xd8] sm:$0xff] 0.0
    %50 = vst [vmem:[#allocation2 + $0xe0] sm:$0xff] 0.0
    %51 = vst [vmem:[#allocation2 + $0xe8] sm:$0xff] 0.0
    %52 = vst [vmem:[#allocation2 + $0xf0] sm:$0xff] 0.0
    %53 = vst [vmem:[#allocation2 + $0xf8] sm:$0xff] 0.0
  $region21: #{dmgin_forward.5} parent=0 // pred_fallthru
    _
  %v54 = vld [vmem:[%s0] sm:$0xff]
  %v55 = vld [vmem:[%s0 + $0x8] sm:$0xff]
  %v56 = vld [vmem:[%s0 + $0x10] sm:$0xff]
  %v57 = vld [vmem:[%s0 + $0x18] sm:$0xff]
  %v58 = vunpack.c.l.s8.bf16 %v54
  %v59 = vunpack.c.h.s8.bf16 %v54
  %v60 = vunpack.c.l.s8.bf16 %v55
  %v61 = vunpack.c.h.s8.bf16 %v55
  %v62 = vunpack.c.l.s8.bf16 %v56
  %v63 = vunpack.c.h.s8.bf16 %v56
  %v64 = vunpack.c.l.s8.bf16 %v57
  %v65 = vunpack.c.h.s8.bf16 %v57
  %s66 = smul.u32 0, 128
  %s67 = sshra.s32 %s66, 3
  %s68 = sand.u32 %s66, 7
  %s69 = smul.u32 %s67, 2
  %s70 = smul.addr %s69, 4
  %s71 = scalar_lea.vmem %s1, %s70
  %v72 = vld [vmem:[%s71] sm:$0xff]
  %v73 = vld [vmem:[%s71 + $0x8] sm:$0xff]
  %v74 = vld [vmem:[%s71 + $0x10] sm:$0xff]
  %v75 = vld [vmem:[%s71 + $0x18] sm:$0xff]
  %v76 = vld [vmem:[%s71 + $0x20] sm:$0xff]
  %v77 = vld [vmem:[%s71 + $0x28] sm:$0xff]
  %v78 = vld [vmem:[%s71 + $0x30] sm:$0xff]
  %v79 = vld [vmem:[%s71 + $0x38] sm:$0xff]
  %v80 = vld [vmem:[%s71 + $0x40] sm:$0xff]
  %v81 = vld [vmem:[%s71 + $0x48] sm:$0xff]
  %v82 = vld [vmem:[%s71 + $0x50] sm:$0xff]
  %v83 = vld [vmem:[%s71 + $0x58] sm:$0xff]
  %v84 = vld [vmem:[%s71 + $0x60] sm:$0xff]
  %v85 = vld [vmem:[%s71 + $0x68] sm:$0xff]
  %v86 = vld [vmem:[%s71 + $0x70] sm:$0xff]
  %v87 = vld [vmem:[%s71 + $0x78] sm:$0xff]
  %v88 = vld [vmem:[#allocation2] sm:$0xff]
  %v89 = vld [vmem:[#allocation2 + $0x8] sm:$0xff]
  %v90 = vld [vmem:[#allocation2 + $0x10] sm:$0xff]
  %v91 = vld [vmem:[#allocation2 + $0x18] sm:$0xff]
  %v92 = vld [vmem:[#allocation2 + $0x20] sm:$0xff]
  %v93 = vld [vmem:[#allocation2 + $0x28] sm:$0xff]
  %v94 = vld [vmem:[#allocation2 + $0x30] sm:$0xff]
  %v95 = vld [vmem:[#allocation2 + $0x38] sm:$0xff]
  %v96 = vld [vmem:[#allocation2 + $0x40] sm:$0xff]
  %v97 = vld [vmem:[#allocation2 + $0x48] sm:$0xff]
  %v98 = vld [vmem:[#allocation2 + $0x50] sm:$0xff]
  %v99 = vld [vmem:[#allocation2 + $0x58] sm:$0xff]
  %v100 = vld [vmem:[#allocation2 + $0x60] sm:$0xff]
  %v101 = vld [vmem:[#allocation2 + $0x68] sm:$0xff]
  %v102 = vld [vmem:[#allocation2 + $0x70] sm:$0xff]
  %v103 = vld [vmem:[#allocation2 + $0x78] sm:$0xff]
  %v104 = vld [vmem:[#allocation2 + $0x80] sm:$0xff]
  %v105 = vld [vmem:[#allocation2 + $0x88] sm:$0xff]
  %v106 = vld [vmem:[#allocation2 + $0x90] sm:$0xff]
  %v107 = vld [vmem:[#allocation2 + $0x98] sm:$0xff]
  %v108 = vld [vmem:[#allocation2 + $0xa0] sm:$0xff]
  %v109 = vld [vmem:[#allocation2 + $0xa8] sm:$0xff]
  %v110 = vld [vmem:[#allocation2 + $0xb0] sm:$0xff]
  %v111 = vld [vmem:[#allocation2 + $0xb8] sm:$0xff]
  %v112 = vld [vmem:[#allocation2 + $0xc0] sm:$0xff]
  %v113 = vld [vmem:[#allocation2 + $0xc8] sm:$0xff]
  %v114 = vld [vmem:[#allocation2 + $0xd0] sm:$0xff]
  %v115 = vld [vmem:[#allocation2 + $0xd8] sm:$0xff]
  %v116 = vld [vmem:[#allocation2 + $0xe0] sm:$0xff]
  %v117 = vld [vmem:[#allocation2 + $0xe8] sm:$0xff]
  %v118 = vld [vmem:[#allocation2 + $0xf0] sm:$0xff]
  %v119 = vld [vmem:[#allocation2 + $0xf8] sm:$0xff]
  %v136 = vunpack.c.l.b16 %v72
  %v137 = vunpack.c.h.b16 %v72
  %v138 = vunpack.c.l.b16 %v73
  %v139 = vunpack.c.h.b16 %v73
  %v140 = vunpack.c.l.b16 %v74
  %v141 = vunpack.c.h.b16 %v74
  %v142 = vunpack.c.l.b16 %v75
  %v143 = vunpack.c.h.b16 %v75
  %v144 = vunpack.c.l.b16 %v76
  %v145 = vunpack.c.h.b16 %v76
  %v146 = vunpack.c.l.b16 %v77
  %v147 = vunpack.c.h.b16 %v77
  %v148 = vunpack.c.l.b16 %v78
  %v149 = vunpack.c.h.b16 %v78
  %v150 = vunpack.c.l.b16 %v79
  %v151 = vunpack.c.h.b16 %v79
  %v152 = vunpack.c.l.b16 %v80
  %v153 = vunpack.c.h.b16 %v80
  %v154 = vunpack.c.l.b16 %v81
  %v155 = vunpack.c.h.b16 %v81
  %v156 = vunpack.c.l.b16 %v82
  %v157 = vunpack.c.h.b16 %v82
  %v158 = vunpack.c.l.b16 %v83
  %v159 = vunpack.c.h.b16 %v83
  %v160 = vunpack.c.l.b16 %v84
  %v161 = vunpack.c.h.b16 %v84
  %v162 = vunpack.c.l.b16 %v85
  %v163 = vunpack.c.h.b16 %v85
  %v164 = vunpack.c.l.b16 %v86
  %v165 = vunpack.c.h.b16 %v86
  %v166 = vunpack.c.l.b16 %v87
  %v167 = vunpack.c.h.b16 %v87
  %v168 = vpack.c.b16 %v138, %v136
  %v169 = vpack.c.b16 %v139, %v137
  %v170 = vpack.c.b16 %v142, %v140
  %v171 = vpack.c.b16 %v143, %v141
  %v172 = vpack.c.b16 %v146, %v144
  %v173 = vpack.c.b16 %v147, %v145
  %v174 = vpack.c.b16 %v150, %v148
  %v175 = vpack.c.b16 %v151, %v149
  %v176 = vpack.c.b16 %v154, %v152
  %v177 = vpack.c.b16 %v155, %v153
  %v178 = vpack.c.b16 %v158, %v156
  %v179 = vpack.c.b16 %v159, %v157
  %v180 = vpack.c.b16 %v162, %v160
  %v181 = vpack.c.b16 %v163, %v161
  %v182 = vpack.c.b16 %v166, %v164
  %v183 = vpack.c.b16 %v167, %v165
  %200 = vmatprep.subr.bf16.mxu0 %v169
  %201 = vmatpush1.bf16.msra.mxu0 %v168
  %202 = vmatprep.subr.bf16.mxu0 %v171
  %203 = vmatpush1.bf16.msra.mxu0 %v170
  %204 = vmatprep.subr.bf16.mxu0 %v173
  %205 = vmatpush1.bf16.msra.mxu0 %v172
  %206 = vmatprep.subr.bf16.mxu0 %v175
  %207 = vmatpush1.bf16.msra.mxu0 %v174
  %208 = vmatprep.subr.bf16.mxu0 %v177
  %209 = vmatpush1.bf16.msra.mxu0 %v176
  %210 = vmatprep.subr.bf16.mxu0 %v179
  %211 = vmatpush1.bf16.msra.mxu0 %v178
  %212 = vmatprep.subr.bf16.mxu0 %v181
  %213 = vmatpush1.bf16.msra.mxu0 %v180
  %214 = vmatprep.subr.bf16.mxu0 %v183
  %215 = vmatpush1.bf16.msra.mxu0 %v182
  %216 = vmatprep.subr.bf16.mxu0 0
  %217 = vmatpush1.bf16.msra.mxu0 0
  %218 = vmatprep.subr.bf16.mxu0 0
  %219 = vmatpush1.bf16.msra.mxu0 0
  %220 = vmatprep.subr.bf16.mxu0 0
  %221 = vmatpush1.bf16.msra.mxu0 0
  %222 = vmatprep.subr.bf16.mxu0 0
  %223 = vmatpush1.bf16.msra.mxu0 0
  %224 = vmatprep.subr.bf16.mxu0 0
  %225 = vmatpush1.bf16.msra.mxu0 0
  %226 = vmatprep.subr.bf16.mxu0 0
  %227 = vmatpush1.bf16.msra.mxu0 0
  %228 = vmatprep.subr.bf16.mxu0 0
  %229 = vmatpush1.bf16.msra.mxu0 0
  %230 = vmatprep.subr.bf16.mxu0 0
  %231 = vmatpush1.bf16.msra.mxu0 0
  %232 = vmatprep.mubr.bf16.mxu0 0
  %233 = vmatmul.mubr.bf16.gmra.mrb[0].mxu0 %v58
  %v234 = vpop.f32.mrb[0].mxu0
  %v235 = vadd.f32 0.0, %v234
  %v236 = vpop.f32.mrb[0].mxu0
  %v237 = vadd.f32 0.0, %v236
  %v238 = vpop.f32.mrb[0].mxu0
  %v239 = vadd.f32 0.0, %v238
  %v240 = vpop.f32.mrb[0].mxu0
  %v241 = vadd.f32 0.0, %v240
  %242 = vmatprep.mubr.bf16.mxu0 0
  %243 = vmatmul.mubr.bf16.gmra.mrb[0].mxu0 %v59
  %v244 = vpop.f32.mrb[0].mxu0
  %v245 = vadd.f32 0.0, %v244
  %v246 = vpop.f32.mrb[0].mxu0
  %v247 = vadd.f32 0.0, %v246
  %v248 = vpop.f32.mrb[0].mxu0
  %v249 = vadd.f32 0.0, %v248
  %v250 = vpop.f32.mrb[0].mxu0
  %v251 = vadd.f32 0.0, %v250
  %252 = vmatprep.mubr.bf16.mxu0 0
  %253 = vmatmul.mubr.bf16.gmra.mrb[0].mxu0 %v60
  %v254 = vpop.f32.mrb[0].mxu0
  %v255 = vadd.f32 0.0, %v254
  %v256 = vpop.f32.mrb[0].mxu0
  %v257 = vadd.f32 0.0, %v256
  %v258 = vpop.f32.mrb[0].mxu0
  %v259 = vadd.f32 0.0, %v258
  %v260 = vpop.f32.mrb[0].mxu0
  %v261 = vadd.f32 0.0, %v260
  %262 = vmatprep.mubr.bf16.mxu0 0
  %263 = vmatmul.mubr.bf16.gmra.mrb[0].mxu0 %v61
  %v264 = vpop.f32.mrb[0].mxu0
  %v265 = vadd.f32 0.0, %v264
  %v266 = vpop.f32.mrb[0].mxu0
  %v267 = vadd.f32 0.0, %v266
  %v268 = vpop.f32.mrb[0].mxu0
  %v269 = vadd.f32 0.0, %v268
  %v270 = vpop.f32.mrb[0].mxu0
  %v271 = vadd.f32 0.0, %v270
  %272 = vmatprep.mubr.bf16.mxu0 0
  %273 = vmatmul.mubr.bf16.gmra.mrb[0].mxu0 %v62
  %v274 = vpop.f32.mrb[0].mxu0
  %v275 = vadd.f32 0.0, %v274
  %v276 = vpop.f32.mrb[0].mxu0
  %v277 = vadd.f32 0.0, %v276
  %v278 = vpop.f32.mrb[0].mxu0
  %v279 = vadd.f32 0.0, %v278
  %v280 = vpop.f32.mrb[0].mxu0
  %v281 = vadd.f32 0.0, %v280
  %282 = vmatprep.mubr.bf16.mxu0 0
  %283 = vmatmul.mubr.bf16.gmra.mrb[0].mxu0 %v63
  %v284 = vpop.f32.mrb[0].mxu0
  %v285 = vadd.f32 0.0, %v284
  %v286 = vpop.f32.mrb[0].mxu0
  %v287 = vadd.f32 0.0, %v286
  %v288 = vpop.f32.mrb[0].mxu0
  %v289 = vadd.f32 0.0, %v288
  %v290 = vpop.f32.mrb[0].mxu0
  %v291 = vadd.f32 0.0, %v290
  %292 = vmatprep.mubr.bf16.mxu0 0
  %293 = vmatmul.mubr.bf16.gmra.mrb[0].mxu0 %v64
  %v294 = vpop.f32.mrb[0].mxu0
  %v295 = vadd.f32 0.0, %v294
  %v296 = vpop.f32.mrb[0].mxu0
  %v297 = vadd.f32 0.0, %v296
  %v298 = vpop.f32.mrb[0].mxu0
  %v299 = vadd.f32 0.0, %v298
  %v300 = vpop.f32.mrb[0].mxu0
  %v301 = vadd.f32 0.0, %v300
  %302 = vmatprep.mubr.bf16.mxu0 0
  %303 = vmatmul.mubr.bf16.gmra.mrb[0].mxu0 %v65
  %v304 = vpop.f32.mrb[0].mxu0
  %v305 = vadd.f32 0.0, %v304
  %v306 = vpop.f32.mrb[0].mxu0
  %v307 = vadd.f32 0.0, %v306
  %v308 = vpop.f32.mrb[0].mxu0
  %v309 = vadd.f32 0.0, %v308
  %v310 = vpop.f32.mrb[0].mxu0
  %v311 = vadd.f32 0.0, %v310
  %312 = vdwg.mxu0
  %v313 = vadd.f32 %v88, %v235
  %v314 = vadd.f32 %v89, %v237
  %v315 = vadd.f32 %v90, %v239
  %v316 = vadd.f32 %v91, %v241
  %v317 = vadd.f32 %v92, %v245
  %v318 = vadd.f32 %v93, %v247
  %v319 = vadd.f32 %v94, %v249
  %v320 = vadd.f32 %v95, %v251
  %v321 = vadd.f32 %v96, %v255
  %v322 = vadd.f32 %v97, %v257
  %v323 = vadd.f32 %v98, %v259
  %v324 = vadd.f32 %v99, %v261
  %v325 = vadd.f32 %v100, %v265
  %v326 = vadd.f32 %v101, %v267
  %v327 = vadd.f32 %v102, %v269
  %v328 = vadd.f32 %v103, %v271
  %v329 = vadd.f32 %v104, %v275
  %v330 = vadd.f32 %v105, %v277
  %v331 = vadd.f32 %v106, %v279
  %v332 = vadd.f32 %v107, %v281
  %v333 = vadd.f32 %v108, %v285
  %v334 = vadd.f32 %v109, %v287
  %v335 = vadd.f32 %v110, %v289
  %v336 = vadd.f32 %v111, %v291
  %v337 = vadd.f32 %v112, %v295
  %v338 = vadd.f32 %v113, %v297
  %v339 = vadd.f32 %v114, %v299
  %v340 = vadd.f32 %v115, %v301
  %v341 = vadd.f32 %v116, %v305
  %v342 = vadd.f32 %v117, %v307
  %v343 = vadd.f32 %v118, %v309
  %v344 = vadd.f32 %v119, %v311
  %345 = vst [vmem:[#allocation2] sm:$0xff] %v313
  %346 = vst [vmem:[#allocation2 + $0x8] sm:$0xff] %v314
  %347 = vst [vmem:[#allocation2 + $0x10] sm:$0xff] %v315
  %348 = vst [vmem:[#allocation2 + $0x18] sm:$0xff] %v316
  %349 = vst [vmem:[#allocation2 + $0x20] sm:$0xff] %v317
  %350 = vst [vmem:[#allocation2 + $0x28] sm:$0xff] %v318
  %351 = vst [vmem:[#allocation2 + $0x30] sm:$0xff] %v319
  %352 = vst [vmem:[#allocation2 + $0x38] sm:$0xff] %v320
  %353 = vst [vmem:[#allocation2 + $0x40] sm:$0xff] %v321
  %354 = vst [vmem:[#allocation2 + $0x48] sm:$0xff] %v322
  %355 = vst [vmem:[#allocation2 + $0x50] sm:$0xff] %v323
  %356 = vst [vmem:[#allocation2 + $0x58] sm:$0xff] %v324
  %357 = vst [vmem:[#allocation2 + $0x60] sm:$0xff] %v325
  %358 = vst [vmem:[#allocation2 + $0x68] sm:$0xff] %v326
  %359 = vst [vmem:[#allocation2 + $0x70] sm:$0xff] %v327
  %360 = vst [vmem:[#allocation2 + $0x78] sm:$0xff] %v328
  %361 = vst [vmem:[#allocation2 + $0x80] sm:$0xff] %v329
  %362 = vst [vmem:[#allocation2 + $0x88] sm:$0xff] %v330
  %363 = vst [vmem:[#allocation2 + $0x90] sm:$0xff] %v331
  %364 = vst [vmem:[#allocation2 + $0x98] sm:$0xff] %v332
  %365 = vst [vmem:[#allocation2 + $0xa0] sm:$0xff] %v333
  %366 = vst [vmem:[#allocation2 + $0xa8] sm:$0xff] %v334
  %367 = vst [vmem:[#allocation2 + $0xb0] sm:$0xff] %v335
  %368 = vst [vmem:[#allocation2 + $0xb8] sm:$0xff] %v336
  %369 = vst [vmem:[#allocation2 + $0xc0] sm:$0xff] %v337
  %370 = vst [vmem:[#allocation2 + $0xc8] sm:$0xff] %v338
  %371 = vst [vmem:[#allocation2 + $0xd0] sm:$0xff] %v339
  %372 = vst [vmem:[#allocation2 + $0xd8] sm:$0xff] %v340
  %373 = vst [vmem:[#allocation2 + $0xe0] sm:$0xff] %v341
  %374 = vst [vmem:[#allocation2 + $0xe8] sm:$0xff] %v342
  %375 = vst [vmem:[#allocation2 + $0xf0] sm:$0xff] %v343
  %376 = vst [vmem:[#allocation2 + $0xf8] sm:$0xff] %v344
  // Predicated region
  $region22: #{dmgin_forward.5} parent=0 // pred_check
    %p377 = pneg %p18
  $region23: #{dmgin_forward.5} parent=0 // pred_check_branch
    %379 = sbr.rel (%p377) target = $region25
  $region24: #{dmgin_forward.5} parent=0 // pred_region
    %v380 = vld [vmem:[#allocation2] sm:$0xff]
    %v381 = vld [vmem:[#allocation2 + $0x8] sm:$0xff]
    %v382 = vld [vmem:[#allocation2 + $0x10] sm:$0xff]
    %v383 = vld [vmem:[#allocation2 + $0x18] sm:$0xff]
    %v384 = vld [vmem:[#allocation2 + $0x20] sm:$0xff]
    %v385 = vld [vmem:[#allocation2 + $0x28] sm:$0xff]
    %v386 = vld [vmem:[#allocation2 + $0x30] sm:$0xff]
    %v387 = vld [vmem:[#allocation2 + $0x38] sm:$0xff]
    %v388 = vld [vmem:[#allocation2 + $0x40] sm:$0xff]
    %v389 = vld [vmem:[#allocation2 + $0x48] sm:$0xff]
    %v390 = vld [vmem:[#allocation2 + $0x50] sm:$0xff]
    %v391 = vld [vmem:[#allocation2 + $0x58] sm:$0xff]
    %v392 = vld [vmem:[#allocation2 + $0x60] sm:$0xff]
    %v393 = vld [vmem:[#allocation2 + $0x68] sm:$0xff]
    %v394 = vld [vmem:[#allocation2 + $0x70] sm:$0xff]
    %v395 = vld [vmem:[#allocation2 + $0x78] sm:$0xff]
    %v396 = vld [vmem:[#allocation2 + $0x80] sm:$0xff]
    %v397 = vld [vmem:[#allocation2 + $0x88] sm:$0xff]
    %v398 = vld [vmem:[#allocation2 + $0x90] sm:$0xff]
    %v399 = vld [vmem:[#allocation2 + $0x98] sm:$0xff]
    %v400 = vld [vmem:[#allocation2 + $0xa0] sm:$0xff]
    %v401 = vld [vmem:[#allocation2 + $0xa8] sm:$0xff]
    %v402 = vld [vmem:[#allocation2 + $0xb0] sm:$0xff]
    %v403 = vld [vmem:[#allocation2 + $0xb8] sm:$0xff]
    %v404 = vld [vmem:[#allocation2 + $0xc0] sm:$0xff]
    %v405 = vld [vmem:[#allocation2 + $0xc8] sm:$0xff]
    %v406 = vld [vmem:[#allocation2 + $0xd0] sm:$0xff]
    %v407 = vld [vmem:[#allocation2 + $0xd8] sm:$0xff]
    %v408 = vld [vmem:[#allocation2 + $0xe0] sm:$0xff]
    %v409 = vld [vmem:[#allocation2 + $0xe8] sm:$0xff]
    %v410 = vld [vmem:[#allocation2 + $0xf0] sm:$0xff]
    %v411 = vld [vmem:[#allocation2 + $0xf8] sm:$0xff]
    %v412 = vpack.c.bf16 %v382, %v380
    %v413 = vpack.c.bf16 %v383, %v381
    %v414 = vpack.c.bf16 %v386, %v384
    %v415 = vpack.c.bf16 %v387, %v385
    %v416 = vpack.c.bf16 %v390, %v388
    %v417 = vpack.c.bf16 %v391, %v389
    %v418 = vpack.c.bf16 %v394, %v392
    %v419 = vpack.c.bf16 %v395, %v393
    %v420 = vpack.c.bf16 %v398, %v396
    %v421 = vpack.c.bf16 %v399, %v397
    %v422 = vpack.c.bf16 %v402, %v400
    %v423 = vpack.c.bf16 %v403, %v401
    %v424 = vpack.c.bf16 %v406, %v404
    %v425 = vpack.c.bf16 %v407, %v405
    %v426 = vpack.c.bf16 %v410, %v408
    %v427 = vpack.c.bf16 %v411, %v409
    %v428 = vld [vmem:[%s2] sm:$0xff]
    %v429 = vld [vmem:[%s2 + $0x8] sm:$0xff]
    %v430 = vld [vmem:[%s2 + $0x10] sm:$0xff]
    %v431 = vld [vmem:[%s2 + $0x18] sm:$0xff]
    %v432 = vld [vmem:[%s2 + $0x20] sm:$0xff]
    %v433 = vld [vmem:[%s2 + $0x28] sm:$0xff]
    %v434 = vld [vmem:[%s2 + $0x30] sm:$0xff]
    %v435 = vld [vmem:[%s2 + $0x38] sm:$0xff]
    %v436 = vld [vmem:[%s2 + $0x40] sm:$0xff]
    %v437 = vld [vmem:[%s2 + $0x48] sm:$0xff]
    %v438 = vld [vmem:[%s2 + $0x50] sm:$0xff]
    %v439 = vld [vmem:[%s2 + $0x58] sm:$0xff]
    %v440 = vld [vmem:[%s2 + $0x60] sm:$0xff]
    %v441 = vld [vmem:[%s2 + $0x68] sm:$0xff]
    %v442 = vld [vmem:[%s2 + $0x70] sm:$0xff]
    %v443 = vld [vmem:[%s2 + $0x78] sm:$0xff]
    %v444 = vld [vmem:[%s2 + $0x80] sm:$0xff]
    %v445 = vld [vmem:[%s2 + $0x88] sm:$0xff]
    %v446 = vld [vmem:[%s2 + $0x90] sm:$0xff]
    %v447 = vld [vmem:[%s2 + $0x98] sm:$0xff]
    %v448 = vld [vmem:[%s2 + $0xa0] sm:$0xff]
    %v449 = vld [vmem:[%s2 + $0xa8] sm:$0xff]
    %v450 = vld [vmem:[%s2 + $0xb0] sm:$0xff]
    %v451 = vld [vmem:[%s2 + $0xb8] sm:$0xff]
    %v452 = vld [vmem:[%s2 + $0xc0] sm:$0xff]
    %v453 = vld [vmem:[%s2 + $0xc8] sm:$0xff]
    %v454 = vld [vmem:[%s2 + $0xd0] sm:$0xff]
    %v455 = vld [vmem:[%s2 + $0xd8] sm:$0xff]
    %v456 = vld [vmem:[%s2 + $0xe0] sm:$0xff]
    %v457 = vld [vmem:[%s2 + $0xe8] sm:$0xff]
    %v458 = vld [vmem:[%s2 + $0xf0] sm:$0xff]
    %v459 = vld [vmem:[%s2 + $0xf8] sm:$0xff]
    %v460 = vld [vmem:[%s3] sm:$0x3]
    %v462 = vlaneseq
    %v463 = vshrl.u32 %v462, 7
    %v464 = vsub.s32 0, %v463
    %v465 = vrot.slane %v460, %v464
    %v466 = vlaneseq
    %v467 = vshrl.u32 %v466, 7
    %v468 = vsub.s32 1, %v467
    %v469 = vrot.slane %v460, %v468
    %v504 = vunpack.c.l.b16 %v428
    %v505 = vunpack.c.h.b16 %v428
    %v506 = vunpack.c.l.b16 %v429
    %v507 = vunpack.c.h.b16 %v429
    %v508 = vunpack.c.l.b16 %v430
    %v509 = vunpack.c.h.b16 %v430
    %v510 = vunpack.c.l.b16 %v431
    %v511 = vunpack.c.h.b16 %v431
    %v512 = vunpack.c.l.b16 %v432
    %v513 = vunpack.c.h.b16 %v432
    %v514 = vunpack.c.l.b16 %v433
    %v515 = vunpack.c.h.b16 %v433
    %v516 = vunpack.c.l.b16 %v434
    %v517 = vunpack.c.h.b16 %v434
    %v518 = vunpack.c.l.b16 %v435
    %v519 = vunpack.c.h.b16 %v435
    %v520 = vunpack.c.l.b16 %v436
    %v521 = vunpack.c.h.b16 %v436
    %v522 = vunpack.c.l.b16 %v437
    %v523 = vunpack.c.h.b16 %v437
    %v524 = vunpack.c.l.b16 %v438
    %v525 = vunpack.c.h.b16 %v438
    %v526 = vunpack.c.l.b16 %v439
    %v527 = vunpack.c.h.b16 %v439
    %v528 = vunpack.c.l.b16 %v440
    %v529 = vunpack.c.h.b16 %v440
    %v530 = vunpack.c.l.b16 %v441
    %v531 = vunpack.c.h.b16 %v441
    %v532 = vunpack.c.l.b16 %v442
    %v533 = vunpack.c.h.b16 %v442
    %v534 = vunpack.c.l.b16 %v443
    %v535 = vunpack.c.h.b16 %v443
    %v536 = vunpack.c.l.b16 %v444
    %v537 = vunpack.c.h.b16 %v444
    %v538 = vunpack.c.l.b16 %v445
    %v539 = vunpack.c.h.b16 %v445
    %v540 = vunpack.c.l.b16 %v446
    %v541 = vunpack.c.h.b16 %v446
    %v542 = vunpack.c.l.b16 %v447
    %v543 = vunpack.c.h.b16 %v447
    %v544 = vunpack.c.l.b16 %v448
    %v545 = vunpack.c.h.b16 %v448
    %v546 = vunpack.c.l.b16 %v449
    %v547 = vunpack.c.h.b16 %v449
    %v548 = vunpack.c.l.b16 %v450
    %v549 = vunpack.c.h.b16 %v450
    %v550 = vunpack.c.l.b16 %v451
    %v551 = vunpack.c.h.b16 %v451
    %v552 = vunpack.c.l.b16 %v452
    %v553 = vunpack.c.h.b16 %v452
    %v554 = vunpack.c.l.b16 %v453
    %v555 = vunpack.c.h.b16 %v453
    %v556 = vunpack.c.l.b16 %v454
    %v557 = vunpack.c.h.b16 %v454
    %v558 = vunpack.c.l.b16 %v455
    %v559 = vunpack.c.h.b16 %v455
    %v560 = vunpack.c.l.b16 %v456
    %v561 = vunpack.c.h.b16 %v456
    %v562 = vunpack.c.l.b16 %v457
    %v563 = vunpack.c.h.b16 %v457
    %v564 = vunpack.c.l.b16 %v458
    %v565 = vunpack.c.h.b16 %v458
    %v566 = vunpack.c.l.b16 %v459
    %v567 = vunpack.c.h.b16 %v459
    %v568 = vpack.c.b16 %v506, %v504
    %v569 = vpack.c.b16 %v507, %v505
    %v570 = vpack.c.b16 %v510, %v508
    %v571 = vpack.c.b16 %v511, %v509
    %v572 = vpack.c.b16 %v514, %v512
    %v573 = vpack.c.b16 %v515, %v513
    %v574 = vpack.c.b16 %v518, %v516
    %v575 = vpack.c.b16 %v519, %v517
    %v576 = vpack.c.b16 %v522, %v520
    %v577 = vpack.c.b16 %v523, %v521
    %v578 = vpack.c.b16 %v526, %v524
    %v579 = vpack.c.b16 %v527, %v525
    %v580 = vpack.c.b16 %v530, %v528
    %v581 = vpack.c.b16 %v531, %v529
    %v582 = vpack.c.b16 %v534, %v532
    %v583 = vpack.c.b16 %v535, %v533
    %v584 = vpack.c.b16 %v538, %v536
    %v585 = vpack.c.b16 %v539, %v537
    %v586 = vpack.c.b16 %v542, %v540
    %v587 = vpack.c.b16 %v543, %v541
    %v588 = vpack.c.b16 %v546, %v544
    %v589 = vpack.c.b16 %v547, %v545
    %v590 = vpack.c.b16 %v550, %v548
    %v591 = vpack.c.b16 %v551, %v549
    %v592 = vpack.c.b16 %v554, %v552
    %v593 = vpack.c.b16 %v555, %v553
    %v594 = vpack.c.b16 %v558, %v556
    %v595 = vpack.c.b16 %v559, %v557
    %v596 = vpack.c.b16 %v562, %v560
    %v597 = vpack.c.b16 %v563, %v561
    %v598 = vpack.c.b16 %v566, %v564
    %v599 = vpack.c.b16 %v567, %v565
    %632 = vmatprep.subr.bf16.mxu0 %v569
    %633 = vmatpush1.bf16.msra.mxu0 %v568
    %634 = vmatprep.subr.bf16.mxu0 %v571
    %635 = vmatpush1.bf16.msra.mxu0 %v570
    %636 = vmatprep.subr.bf16.mxu0 %v573
    %637 = vmatpush1.bf16.msra.mxu0 %v572
    %638 = vmatprep.subr.bf16.mxu0 %v575
    %639 = vmatpush1.bf16.msra.mxu0 %v574
    %640 = vmatprep.subr.bf16.mxu0 %v577
    %641 = vmatpush1.bf16.msra.mxu0 %v576
    %642 = vmatprep.subr.bf16.mxu0 %v579
    %643 = vmatpush1.bf16.msra.mxu0 %v578
    %644 = vmatprep.subr.bf16.mxu0 %v581
    %645 = vmatpush1.bf16.msra.mxu0 %v580
    %646 = vmatprep.subr.bf16.mxu0 %v583
    %647 = vmatpush1.bf16.msra.mxu0 %v582
    %648 = vmatprep.subr.bf16.mxu0 %v585
    %649 = vmatpush1.bf16.msra.mxu0 %v584
    %650 = vmatprep.subr.bf16.mxu0 %v587
    %651 = vmatpush1.bf16.msra.mxu0 %v586
    %652 = vmatprep.subr.bf16.mxu0 %v589
    %653 = vmatpush1.bf16.msra.mxu0 %v588
    %654 = vmatprep.subr.bf16.mxu0 %v591
    %655 = vmatpush1.bf16.msra.mxu0 %v590
    %656 = vmatprep.subr.bf16.mxu0 %v593
    %657 = vmatpush1.bf16.msra.mxu0 %v592
    %658 = vmatprep.subr.bf16.mxu0 %v595
    %659 = vmatpush1.bf16.msra.mxu0 %v594
    %660 = vmatprep.subr.bf16.mxu0 %v597
    %661 = vmatpush1.bf16.msra.mxu0 %v596
    %662 = vmatprep.subr.bf16.mxu0 %v599
    %663 = vmatpush1.bf16.msra.mxu0 %v598
    %664 = vmatprep.mubr.bf16.mxu0 %v413
    %665 = vmatmul.mubr.bf16.gmra.mrb[0].mxu0 %v412
    %v666 = vpop.f32.mrb[0].mxu0
    %v667 = vadd.f32 %v465, %v666
    %v668 = vpop.f32.mrb[0].mxu0
    %v669 = vadd.f32 %v469, %v668
    %v670 = vpop.f32.mrb[0].mxu0
    %v671 = vadd.f32 %v465, %v670
    %v672 = vpop.f32.mrb[0].mxu0
    %v673 = vadd.f32 %v469, %v672
    %674 = vmatprep.mubr.bf16.mxu0 %v415
    %675 = vmatmul.mubr.bf16.gmra.mrb[0].mxu0 %v414
    %v676 = vpop.f32.mrb[0].mxu0
    %v677 = vadd.f32 %v465, %v676
    %v678 = vpop.f32.mrb[0].mxu0
    %v679 = vadd.f32 %v469, %v678
    %v680 = vpop.f32.mrb[0].mxu0
    %v681 = vadd.f32 %v465, %v680
    %v682 = vpop.f32.mrb[0].mxu0
    %v683 = vadd.f32 %v469, %v682
    %684 = vmatprep.mubr.bf16.mxu0 %v417
    %685 = vmatmul.mubr.bf16.gmra.mrb[0].mxu0 %v416
    %v686 = vpop.f32.mrb[0].mxu0
    %v687 = vadd.f32 %v465, %v686
    %v688 = vpop.f32.mrb[0].mxu0
    %v689 = vadd.f32 %v469, %v688
    %v690 = vpop.f32.mrb[0].mxu0
    %v691 = vadd.f32 %v465, %v690
    %v692 = vpop.f32.mrb[0].mxu0
    %v693 = vadd.f32 %v469, %v692
    %694 = vmatprep.mubr.bf16.mxu0 %v419
    %695 = vmatmul.mubr.bf16.gmra.mrb[0].mxu0 %v418
    %v696 = vpop.f32.mrb[0].mxu0
    %v697 = vadd.f32 %v465, %v696
    %v698 = vpop.f32.mrb[0].mxu0
    %v699 = vadd.f32 %v469, %v698
    %v700 = vpop.f32.mrb[0].mxu0
    %v701 = vadd.f32 %v465, %v700
    %v702 = vpop.f32.mrb[0].mxu0
    %v703 = vadd.f32 %v469, %v702
    %704 = vmatprep.mubr.bf16.mxu0 %v421
    %705 = vmatmul.mubr.bf16.gmra.mrb[0].mxu0 %v420
    %v706 = vpop.f32.mrb[0].mxu0
    %v707 = vadd.f32 %v465, %v706
    %v708 = vpop.f32.mrb[0].mxu0
    %v709 = vadd.f32 %v469, %v708
    %v710 = vpop.f32.mrb[0].mxu0
    %v711 = vadd.f32 %v465, %v710
    %v712 = vpop.f32.mrb[0].mxu0
    %v713 = vadd.f32 %v469, %v712
    %714 = vmatprep.mubr.bf16.mxu0 %v423
    %715 = vmatmul.mubr.bf16.gmra.mrb[0].mxu0 %v422
    %v716 = vpop.f32.mrb[0].mxu0
    %v717 = vadd.f32 %v465, %v716
    %v718 = vpop.f32.mrb[0].mxu0
    %v719 = vadd.f32 %v469, %v718
    %v720 = vpop.f32.mrb[0].mxu0
    %v721 = vadd.f32 %v465, %v720
    %v722 = vpop.f32.mrb[0].mxu0
    %v723 = vadd.f32 %v469, %v722
    %724 = vmatprep.mubr.bf16.mxu0 %v425
    %725 = vmatmul.mubr.bf16.gmra.mrb[0].mxu0 %v424
    %v726 = vpop.f32.mrb[0].mxu0
    %v727 = vadd.f32 %v465, %v726
    %v728 = vpop.f32.mrb[0].mxu0
    %v729 = vadd.f32 %v469, %v728
    %v730 = vpop.f32.mrb[0].mxu0
    %v731 = vadd.f32 %v465, %v730
    %v732 = vpop.f32.mrb[0].mxu0
    %v733 = vadd.f32 %v469, %v732
    %734 = vmatprep.mubr.bf16.mxu0 %v427
    %735 = vmatmul.mubr.bf16.gmra.mrb[0].mxu0 %v426
    %v736 = vpop.f32.mrb[0].mxu0
    %v737 = vadd.f32 %v465, %v736
    %v738 = vpop.f32.mrb[0].mxu0
    %v739 = vadd.f32 %v469, %v738
    %v740 = vpop.f32.mrb[0].mxu0
    %v741 = vadd.f32 %v465, %v740
    %v742 = vpop.f32.mrb[0].mxu0
    %v743 = vadd.f32 %v469, %v742
    %744 = vdwg.mxu0
    %v745 = vpack.c.bf16 %v671, %v667
    %v746 = vpack.c.bf16 %v673, %v669
    %v747 = vpack.c.bf16 %v681, %v677
    %v748 = vpack.c.bf16 %v683, %v679
    %v749 = vpack.c.bf16 %v691, %v687
    %v750 = vpack.c.bf16 %v693, %v689
    %v751 = vpack.c.bf16 %v701, %v697
    %v752 = vpack.c.bf16 %v703, %v699
    %v753 = vpack.c.bf16 %v711, %v707
    %v754 = vpack.c.bf16 %v713, %v709
    %v755 = vpack.c.bf16 %v721, %v717
    %v756 = vpack.c.bf16 %v723, %v719
    %v757 = vpack.c.bf16 %v731, %v727
    %v758 = vpack.c.bf16 %v733, %v729
    %v759 = vpack.c.bf16 %v741, %v737
    %v760 = vpack.c.bf16 %v743, %v739
    %v777 = vunpack.c.l.b16 %v745
    %v778 = vunpack.c.l.b16 %v746
    %v779 = vunpack.c.h.b16 %v745
    %v780 = vunpack.c.h.b16 %v746
    %v781 = vunpack.c.l.b16 %v747
    %v782 = vunpack.c.l.b16 %v748
    %v783 = vunpack.c.h.b16 %v747
    %v784 = vunpack.c.h.b16 %v748
    %v785 = vunpack.c.l.b16 %v749
    %v786 = vunpack.c.l.b16 %v750
    %v787 = vunpack.c.h.b16 %v749
    %v788 = vunpack.c.h.b16 %v750
    %v789 = vunpack.c.l.b16 %v751
    %v790 = vunpack.c.l.b16 %v752
    %v791 = vunpack.c.h.b16 %v751
    %v792 = vunpack.c.h.b16 %v752
    %v793 = vunpack.c.l.b16 %v753
    %v794 = vunpack.c.l.b16 %v754
    %v795 = vunpack.c.h.b16 %v753
    %v796 = vunpack.c.h.b16 %v754
    %v797 = vunpack.c.l.b16 %v755
    %v798 = vunpack.c.l.b16 %v756
    %v799 = vunpack.c.h.b16 %v755
    %v800 = vunpack.c.h.b16 %v756
    %v801 = vunpack.c.l.b16 %v757
    %v802 = vunpack.c.l.b16 %v758
    %v803 = vunpack.c.h.b16 %v757
    %v804 = vunpack.c.h.b16 %v758
    %v805 = vunpack.c.l.b16 %v759
    %v806 = vunpack.c.l.b16 %v760
    %v807 = vunpack.c.h.b16 %v759
    %v808 = vunpack.c.h.b16 %v760
    %v809 = vpack.c.b16 %v778, %v777
    %v810 = vpack.c.b16 %v780, %v779
    %v811 = vpack.c.b16 %v782, %v781
    %v812 = vpack.c.b16 %v784, %v783
    %v813 = vpack.c.b16 %v786, %v785
    %v814 = vpack.c.b16 %v788, %v787
    %v815 = vpack.c.b16 %v790, %v789
    %v816 = vpack.c.b16 %v792, %v791
    %v817 = vpack.c.b16 %v794, %v793
    %v818 = vpack.c.b16 %v796, %v795
    %v819 = vpack.c.b16 %v798, %v797
    %v820 = vpack.c.b16 %v800, %v799
    %v821 = vpack.c.b16 %v802, %v801
    %v822 = vpack.c.b16 %v804, %v803
    %v823 = vpack.c.b16 %v806, %v805
    %v824 = vpack.c.b16 %v808, %v807
    %841 = vst [vmem:[%s4] sm:$0xff] %v809
    %842 = vst [vmem:[%s4 + $0x8] sm:$0xff] %v810
    %843 = vst [vmem:[%s4 + $0x10] sm:$0xff] %v811
    %844 = vst [vmem:[%s4 + $0x18] sm:$0xff] %v812
    %845 = vst [vmem:[%s4 + $0x20] sm:$0xff] %v813
    %846 = vst [vmem:[%s4 + $0x28] sm:$0xff] %v814
    %847 = vst [vmem:[%s4 + $0x30] sm:$0xff] %v815
    %848 = vst [vmem:[%s4 + $0x38] sm:$0xff] %v816
    %849 = vst [vmem:[%s4 + $0x40] sm:$0xff] %v817
    %850 = vst [vmem:[%s4 + $0x48] sm:$0xff] %v818
    %851 = vst [vmem:[%s4 + $0x50] sm:$0xff] %v819
    %852 = vst [vmem:[%s4 + $0x58] sm:$0xff] %v820
    %853 = vst [vmem:[%s4 + $0x60] sm:$0xff] %v821
    %854 = vst [vmem:[%s4 + $0x68] sm:$0xff] %v822
    %855 = vst [vmem:[%s4 + $0x70] sm:$0xff] %v823
    %856 = vst [vmem:[%s4 + $0x78] sm:$0xff] %v824
  $region25: #{dmgin_forward.5} parent=0 // pred_fallthru
    _
  // Predicated region
  $region26: #{dmgin_forward.5} parent=0 // pred_check
    _
  $region27: #{dmgin_forward.5} parent=0 // pred_check_branch
    %858 = sbr.rel (0) target = $region29
  $region28: #{dmgin_forward.5} parent=0 // pred_region
    _
  $region29: #{dmgin_forward.5} parent=0 // pred_fallthru
    _
  // Predicated region
  $region30: #{dmgin_forward.5} parent=0 // pred_check
    _
  $region31: #{dmgin_forward.5} parent=0 // pred_check_branch
    %860 = sbr.rel (0) target = $region33
  $region32: #{dmgin_forward.5} parent=0 // pred_region
    _
  $region33: #{dmgin_forward.5} parent=0 // pred_fallthru
    _

</llo_original>
